<compile_context>
chip_gen: v7x
topology: tpu7x:2x2x1
jax: 0.10.0
libtpu: 0.0.40
codegen_flags: <defaults>
</compile_context>

<pallas_src>
import functools

import jax
import jax.numpy as jnp
from jax.experimental import pallas as pl
from jax.experimental.pallas import tpu as pltpu


# ----------------------------- helpers ---------------------------------------


def _vmem_cap_bytes():
    """~80% of physical VMEM (generation-aware), floored at 32 MiB."""
    phys = 64 * 1024 * 1024  # conservative default (v7x per-TensorCore)
    try:
        cap = getattr(pltpu.get_tpu_info(), "vmem_capacity_bytes", None)
        if cap:
            phys = int(cap)
    except Exception:
        pass
    return max(int(phys * 0.8), 32 * 1024 * 1024)


# ----------------------------- kernels ---------------------------------------


def _k_project_kernel(x_ref, wk_ref, bk_ref, k_ref):
    """k_hwc = (Wk @ x_chw + bk)^T for one batch.

    x_ref : (1, C, HW) f32 (NCHW, read directly — no wrapper transpose)
    wk_ref: (C, C) compute dtype, bk_ref: (C, 1) f32
    k_ref : (1, HW, C) compute dtype
    """
    x_chw = x_ref[0].astype(wk_ref.dtype)                               # (C, HW)
    k_chw = jnp.dot(wk_ref[...], x_chw,
                    preferred_element_type=jnp.float32) + bk_ref[...]   # (C, HW) f32
    k_ref[0] = jnp.transpose(k_chw).astype(k_ref.dtype)                 # (HW, C)


def _attn_proto_kernel(x_ref, wq_ref, bq_ref, k_ref, proto_ref, q_scr, macc_scr,
                       *, num_b, scale, resident_k):
    """Flash-style GAM attention stats + prototype partial sums.

    Grid: (query batch i [parallel], key batch j [arbitrary / reduction, last]).
      x_ref    : (1, C, HW) f32, the current query batch (constant over j)
      wq_ref   : (C, C) compute dtype, bq_ref: (C, 1) f32
      k_ref    : resident (B, HW, C) or per-key-batch (1, HW, C), compute dtype
      proto_ref: (1, C, 1) f32 — softmax-weighted column sum of x for this query batch
      q_scr    : (C, HW) compute dtype — q projection, computed once per query batch
      macc_scr : (1, HW) f32 — running sum over key batches of per-key-batch maxima
    """
    kb = pl.program_id(1)

    @pl.when(kb == 0)
    def _init():
        x_chw = x_ref[0].astype(wq_ref.dtype)                           # (C, HW)
        q = jnp.dot(wq_ref[...], x_chw,
                    preferred_element_type=jnp.float32) + bq_ref[...]   # (C, HW) f32
        q_scr[...] = q.astype(q_scr.dtype)
        macc_scr[...] = jnp.zeros_like(macc_scr)

    k_blk = k_ref[kb] if resident_k else k_ref[0]                       # (HW_k, C)
    # Logit block oriented keys x queries: per-key-batch max is a sublane reduction
    # into a lane-dense (1, HW_q) running statistic.
    s = jnp.dot(k_blk, q_scr[...], preferred_element_type=jnp.float32)  # (HW_k, HW_q)
    macc_scr[...] += jnp.max(s, axis=0, keepdims=True)                  # (1, HW_q)

    @pl.when(kb == num_b - 1)
    def _finalize():
        # mean over key batches, scale, per-query-batch softmax over HW positions
        # (lane reduction), all in f32.
        logits = macc_scr[...] * (scale / num_b)                        # (1, HW_q)
        logits = logits - jnp.max(logits, axis=-1, keepdims=True)
        e = jnp.exp(logits)
        w = e / jnp.sum(e, axis=-1, keepdims=True)                      # (1, HW_q) f32
        # Softmax-weighted column sum of this batch's x (== column sums of x5 = x * x_w),
        # kept entirely in f32: VPU broadcast-multiply + lane reduction.
        x_chw = x_ref[0].astype(jnp.float32)                            # (C, HW)
        proto_ref[0] = jnp.sum(x_chw * w, axis=1, keepdims=True)        # (C, 1) f32


# ----------------------------- wrapper ----------------------------------------


def coatt_layer(x, wq, bq, wk, bk, w6, b6, *, compute_dtype=jnp.bfloat16):
    """CoAttLayer forward.  x: (B, C, H, W) f32; 1x1-conv weights (C, C); biases (C,)."""
    B, C, H, W = x.shape
    HW = H * W
    N = B * HW
    assert C % 128 == 0, "channel_in must be a multiple of 128 (TPU lane width)"
    assert HW % 8 == 0, "H*W must be a multiple of 8 (TPU sublane width)"
    scale = 1.0 / (C ** 0.5)
    bpe = jnp.dtype(compute_dtype).itemsize
    f32 = jnp.float32

    vmem_cap = _vmem_cap_bytes()

    # NCHW presented as (B, C, HW): a free reshape — no wrapper-side transpose of x.
    x3 = x.reshape(B, C, HW).astype(f32)
    wq_c = wq.astype(compute_dtype)
    wk_c = wk.astype(compute_dtype)
    bq2 = bq.reshape(C, 1).astype(f32)
    bk2 = bk.reshape(C, 1).astype(f32)

    # ---- kernel 1: per-batch key projection (Wk @ x + bk)^T -> (B, HW, C) ----
    k_hwc = pl.pallas_call(
        _k_project_kernel,
        grid=(B,),
        in_specs=[pl.BlockSpec((1, C, HW), lambda i: (i, 0, 0)),
                  pl.BlockSpec((C, C), lambda i: (0, 0)),
                  pl.BlockSpec((C, 1), lambda i: (0, 0))],
        out_specs=pl.BlockSpec((1, HW, C), lambda i: (i, 0, 0)),
        out_shape=jax.ShapeDtypeStruct((B, HW, C), compute_dtype),
        cost_estimate=pl.CostEstimate(
            flops=2 * B * C * C * HW,
            transcendentals=0,
            bytes_accessed=B * C * HW * 4 + C * C * bpe + C * 4 + B * HW * C * bpe),
        compiler_params=pltpu.CompilerParams(
            dimension_semantics=("parallel",),
            vmem_limit_bytes=vmem_cap),
    )(x3, wk_c, bk2)

    # ---- kernel 2: fused q projection + flash-style attention stats + proto sums ----
    # Resident-k gating: conservative VMEM estimate counting the pipeline's double buffers.
    est_fixed = (2 * C * HW * 4        # x block (f32, double buffered)
                 + 2 * C * C * bpe     # Wq
                 + 2 * C * 4           # bq
                 + C * HW * bpe        # q scratch
                 + HW * HW * 4         # logits block
                 + HW * 4              # running max-mean scratch
                 + 2 * C * 4)          # proto output block
    resident_k = est_fixed + 2 * N * C * bpe <= int(0.6 * vmem_cap)
    if resident_k:
        # Whole k array resident in VMEM: constant index_map -> DMA'd once per core,
        # cutting k read traffic by (B-1)/B versus per-(i,j) re-fetch.
        k_spec = pl.BlockSpec((B, HW, C), lambda i, j: (0, 0, 0))
        k_bytes = N * C * bpe
    else:
        k_spec = pl.BlockSpec((1, HW, C), lambda i, j: (j, 0, 0))
        k_bytes = B * N * C * bpe

    proto = pl.pallas_call(
        functools.partial(_attn_proto_kernel, num_b=B, scale=scale,
                          resident_k=resident_k),
        grid=(B, B),  # (query batch [parallel], key batch [reduction, last])
        in_specs=[pl.BlockSpec((1, C, HW), lambda i, j: (i, 0, 0)),   # x of query batch
                  pl.BlockSpec((C, C), lambda i, j: (0, 0)),          # Wq
                  pl.BlockSpec((C, 1), lambda i, j: (0, 0)),          # bq
                  k_spec],                                            # k (resident or per-j)
        out_specs=pl.BlockSpec((1, C, 1), lambda i, j: (i, 0, 0)),
        out_shape=jax.ShapeDtypeStruct((B, C, 1), f32),
        scratch_shapes=[pltpu.VMEM((C, HW), compute_dtype),   # q projection
                        pltpu.VMEM((1, HW), f32)],            # running mean-of-max
        cost_estimate=pl.CostEstimate(
            flops=2 * B * C * C * HW + 2 * B * B * HW * HW * C + 2 * B * C * HW,
            transcendentals=B * HW,
            bytes_accessed=B * C * HW * 4 + C * C * bpe + C * 4 + k_bytes + B * C * 4),
        compiler_params=pltpu.CompilerParams(
            dimension_semantics=("parallel", "arbitrary"),
            vmem_limit_bytes=vmem_cap),
    )(x3, wq_c, bq2, k_hwc)

    # ---- prototype finalisation + output (tiny / purely memory-bound, plain XLA) ----
    # conv6 is 1x1 (linear), so mean_{B,H,W}(conv6(x5)) == W6 @ mean_{B,H,W}(x5) + b6.
    x5_mean = jnp.sum(proto[:, :, 0], axis=0) / N                      # (C,) f32
    x_proto = w6.astype(f32) @ x5_mean + b6.astype(f32)                # (C,)
    # weighted_x = x * x_proto, applied directly in NCHW (no output transpose).
    return x * x_proto[None, :, None, None]


# ----------------------------- pure-JAX reference ------------------------------


def coatt_ref(x, wq, bq, wk, bk, w6, b6):
    """Pure-JAX f32 reference mirroring the PyTorch forward (NCHW)."""
    B, C, H, W = x.shape
    HW = H * W

    def conv1x1(z, w, b):
        return jnp.einsum('oc,bchw->bohw', w, z) + b[None, :, None, None]

    xq = conv1x1(x, wq, bq).reshape(B, C, HW)
    xq = jnp.transpose(xq, (0, 2, 1)).reshape(B * HW, C)
    xk = conv1x1(x, wk, bk).reshape(B, C, HW)
    xk = jnp.transpose(xk, (1, 0, 2)).reshape(C, B * HW)
    xw = xq @ xk
    xw = xw.reshape(B * HW, B, HW)
    xw = xw.max(-1).mean(-1)
    xw = xw.reshape(B, HW) * (1.0 / C ** 0.5)
    xw = jax.nn.softmax(xw, axis=-1)
    xw = xw.reshape(B, 1, H, W)
    x5 = x * xw
    x_new = conv1x1(x5, w6, b6)
    x_proto = jnp.mean(x_new, axis=(0, 2, 3)).reshape(1, C, 1, 1)
    return x * x_proto


# ----------------------------- test -------------------------------------------


if __name__ == "__main__":
    B, C, H, W = 2, 128, 16, 16  # channel_in = 128 (lane width), HW = 256

    key = jax.random.PRNGKey(0)
    kx, kwq, kbq, kwk, kbk, kw6, kb6 = jax.random.split(key, 7)

    x = jax.random.normal(kx, (B, C, H, W), jnp.float32)
    # Deterministic synthetic init (stands in for c2_msra_fill of the 1x1 convs).
    std = (2.0 / C) ** 0.5
    wq = jax.random.normal(kwq, (C, C), jnp.float32) * std
    bq = jax.random.normal(kbq, (C,), jnp.float32) * 0.01
    wk = jax.random.normal(kwk, (C, C), jnp.float32) * std
    bk = jax.random.normal(kbk, (C,), jnp.float32) * 0.01
    w6 = jax.random.normal(kw6, (C, C), jnp.float32) * std
    b6 = jax.random.normal(kb6, (C,), jnp.float32) * 0.01

    ref = coatt_ref(x, wq, bq, wk, bk, w6, b6)

    # f32 path: validates exact forward semantics.
    f32_fn = jax.jit(functools.partial(coatt_layer, compute_dtype=jnp.float32))
    out32 = jax.block_until_ready(f32_fn(x, wq, bq, wk, bk, w6, b6))
    assert out32.shape == (B, C, H, W)
    err32 = float(jnp.max(jnp.abs(out32 - ref)))
    assert jnp.allclose(out32, ref, atol=2e-3, rtol=2e-3), err32

    # bf16-MXU path (f32 accumulation / softmax / means): the performance configuration.
    bf16_fn = jax.jit(functools.partial(coatt_layer, compute_dtype=jnp.bfloat16))
    out16 = jax.block_until_ready(bf16_fn(x, wq, bq, wk, bk, w6, b6))
    assert out16.shape == (B, C, H, W)
    err16 = float(jnp.max(jnp.abs(out16 - ref)))
    assert jnp.allclose(out16, ref, atol=1e-2, rtol=1e-2), err16

    print("KERNEL_OK")
</pallas_src>

<mosaic_0001>
module attributes {stable_mosaic.version = 11 : i64} {
  func.func @_attn_proto_kernel(%arg0: i32, %arg1: i32, %arg2: memref<1x128x256xf32, #tpu.memory_space<vmem>>, %arg3: memref<128x128xf32, #tpu.memory_space<vmem>>, %arg4: memref<128x1xf32, #tpu.memory_space<vmem>>, %arg5: memref<2x256x128xf32, #tpu.memory_space<vmem>>, %arg6: memref<1x128x1xf32, #tpu.memory_space<vmem>>, %arg7: memref<128x256xf32, #tpu.memory_space<vmem>>, %arg8: memref<1x256xf32, #tpu.memory_space<vmem>>) attributes {dimension_semantics = [#tpu.dimension_semantics<parallel>, #tpu.dimension_semantics<arbitrary>], iteration_bounds = array<i64: 2, 2>, scalar_prefetch = 0 : i64, scratch_operands = 2 : i64, tpu.core_type = #tpu.core_type<tc>, window_params = [{transform_indices = @transform_0, window_bounds = array<i64: 1, 128, 256>}, {pipeline_mode = #tpu.pipeline_mode<synchronous>, transform_indices = @transform_1, window_bounds = array<i64: 128, 128>}, {pipeline_mode = #tpu.pipeline_mode<synchronous>, transform_indices = @transform_2, window_bounds = array<i64: 128, 1>}, {pipeline_mode = #tpu.pipeline_mode<synchronous>, transform_indices = @transform_3, window_bounds = array<i64: 2, 256, 128>}, {transform_indices = @transform_4, window_bounds = array<i64: 1, 128, 1>}]} {
    %c0_i32 = arith.constant 0 : i32
    %0 = arith.cmpi eq, %arg1, %c0_i32 : i32
    %1 = arith.extui %0 : i1 to i32
    %c0_i32_0 = arith.constant 0 : i32
    %2 = arith.cmpi ne, %1, %c0_i32_0 : i32
    scf.if %2 {
      %c0_10 = arith.constant 0 : index
      %c0_11 = arith.constant 0 : index
      %c0_12 = arith.constant 0 : index
      %16 = vector.load %arg2[%c0_10, %c0_11, %c0_12] : memref<1x128x256xf32, #tpu.memory_space<vmem>>, vector<1x128x256xf32>
      %17 = vector.shape_cast %16 : vector<1x128x256xf32> to vector<128x256xf32>
      %c0_13 = arith.constant 0 : index
      %c0_14 = arith.constant 0 : index
      %18 = vector.load %arg3[%c0_13, %c0_14] : memref<128x128xf32, #tpu.memory_space<vmem>>, vector<128x128xf32>
      %cst_15 = arith.constant dense<0.000000e+00> : vector<128x256xf32>
      %19 = tpu.matmul %18, %17, %cst_15 {dimension_numbers = #tpu.dot_dimension_numbers<[1], [0], [0], [1], [0, 0, 1, 1], [], []>} : vector<128x128xf32>, vector<128x256xf32>, vector<128x256xf32> -> vector<128x256xf32>
      %c0_16 = arith.constant 0 : index
      %c0_17 = arith.constant 0 : index
      %20 = vector.load %arg4[%c0_16, %c0_17] : memref<128x1xf32, #tpu.memory_space<vmem>>, vector<128x1xf32>
      %21 = vector.broadcast %20 : vector<128x1xf32> to vector<128x256xf32>
      %22 = arith.addf %19, %21 : vector<128x256xf32>
      %c0_18 = arith.constant 0 : index
      %c0_19 = arith.constant 0 : index
      %23 = vector.load %arg7[%c0_18, %c0_19] : memref<128x256xf32, #tpu.memory_space<vmem>>, vector<128x256xf32>
      tpu.vector_store %arg7[%c0_18, %c0_19], %22 {strides = array<i32>} : memref<128x256xf32, #tpu.memory_space<vmem>>, vector<128x256xf32>,
      %cst_20 = arith.constant 0.000000e+00 : f32
      %24 = vector.broadcast %cst_20 : f32 to vector<1x256xf32>
      %c0_21 = arith.constant 0 : index
      %c0_22 = arith.constant 0 : index
      %25 = vector.load %arg8[%c0_21, %c0_22] : memref<1x256xf32, #tpu.memory_space<vmem>>, vector<1x256xf32>
      tpu.vector_store %arg8[%c0_21, %c0_22], %24 {strides = array<i32>} : memref<1x256xf32, #tpu.memory_space<vmem>>, vector<1x256xf32>,
    } else {
    }
    %3 = arith.index_cast %arg1 : i32 to index
    %c0 = arith.constant 0 : index
    %c0_1 = arith.constant 0 : index
    %4 = vector.load %arg5[%3, %c0, %c0_1] : memref<2x256x128xf32, #tpu.memory_space<vmem>>, vector<1x256x128xf32>
    %5 = vector.shape_cast %4 : vector<1x256x128xf32> to vector<256x128xf32>
    %c0_2 = arith.constant 0 : index
    %c0_3 = arith.constant 0 : index
    %6 = vector.load %arg7[%c0_2, %c0_3] : memref<128x256xf32, #tpu.memory_space<vmem>>, vector<128x256xf32>
    %cst = arith.constant dense<0.000000e+00> : vector<256x256xf32>
    %7 = tpu.matmul %5, %6, %cst {dimension_numbers = #tpu.dot_dimension_numbers<[1], [0], [0], [1], [0, 0, 1, 1], [], []>} : vector<256x128xf32>, vector<128x256xf32>, vector<256x256xf32> -> vector<256x256xf32>
    %c0_4 = arith.constant 0 : index
    %c0_5 = arith.constant 0 : index
    %8 = vector.load %arg8[%c0_4, %c0_5] : memref<1x256xf32, #tpu.memory_space<vmem>>, vector<1x256xf32>
    %cst_6 = arith.constant dense<0xFF800000> : vector<256xf32>
    %9 = vector.multi_reduction <maximumf>, %7, %cst_6 [0] : vector<256x256xf32> to vector<256xf32>
    %10 = vector.shape_cast %9 : vector<256xf32> to vector<1x256xf32>
    %11 = arith.addf %8, %10 : vector<1x256xf32>
    %c0_7 = arith.constant 0 : index
    %c0_8 = arith.constant 0 : index
    %12 = vector.load %arg8[%c0_7, %c0_8] : memref<1x256xf32, #tpu.memory_space<vmem>>, vector<1x256xf32>
    tpu.vector_store %arg8[%c0_7, %c0_8], %11 {strides = array<i32>} : memref<1x256xf32, #tpu.memory_space<vmem>>, vector<1x256xf32>,
    %c1_i32 = arith.constant 1 : i32
    %13 = arith.cmpi eq, %arg1, %c1_i32 : i32
    %14 = arith.extui %13 : i1 to i32
    %c0_i32_9 = arith.constant 0 : i32
    %15 = arith.cmpi ne, %14, %c0_i32_9 : i32
    scf.if %15 {
      %c0_10 = arith.constant 0 : index
      %c0_11 = arith.constant 0 : index
      %16 = vector.load %arg8[%c0_10, %c0_11] : memref<1x256xf32, #tpu.memory_space<vmem>>, vector<1x256xf32>
      %cst_12 = arith.constant 0.0441941731 : f32
      %17 = vector.broadcast %cst_12 : f32 to vector<1x256xf32>
      %18 = arith.mulf %16, %17 : vector<1x256xf32>
      %cst_13 = arith.constant dense<0xFF800000> : vector<1xf32>
      %19 = vector.multi_reduction <maximumf>, %18, %cst_13 [1] : vector<1x256xf32> to vector<1xf32>
      %20 = vector.shape_cast %19 : vector<1xf32> to vector<1x1xf32>
      %21 = vector.broadcast %20 : vector<1x1xf32> to vector<1x256xf32>
      %22 = arith.subf %18, %21 : vector<1x256xf32>
      %23 = math.exp %22 : vector<1x256xf32>
      %cst_14 = arith.constant dense<0.000000e+00> : vector<1xf32>
      %24 = vector.multi_reduction <add>, %23, %cst_14 [1] : vector<1x256xf32> to vector<1xf32>
      %25 = vector.shape_cast %24 : vector<1xf32> to vector<1x1xf32>
      %26 = vector.broadcast %25 : vector<1x1xf32> to vector<1x256xf32>
      %27 = arith.divf %23, %26 : vector<1x256xf32>
      %c0_15 = arith.constant 0 : index
      %c0_16 = arith.constant 0 : index
      %c0_17 = arith.constant 0 : index
      %28 = vector.load %arg2[%c0_15, %c0_16, %c0_17] : memref<1x128x256xf32, #tpu.memory_space<vmem>>, vector<1x128x256xf32>
      %29 = vector.shape_cast %28 : vector<1x128x256xf32> to vector<128x256xf32>
      %30 = vector.broadcast %27 : vector<1x256xf32> to vector<128x256xf32>
      %31 = arith.mulf %29, %30 : vector<128x256xf32>
      %cst_18 = arith.constant dense<0.000000e+00> : vector<128xf32>
      %32 = vector.multi_reduction <add>, %31, %cst_18 [1] : vector<128x256xf32> to vector<128xf32>
      %33 = vector.shape_cast %32 : vector<128xf32> to vector<128x1xf32>
      %c0_19 = arith.constant 0 : index
      %c0_20 = arith.constant 0 : index
      %c0_21 = arith.constant 0 : index
      %34 = vector.load %arg6[%c0_19, %c0_20, %c0_21] : memref<1x128x1xf32, #tpu.memory_space<vmem>>, vector<1x128x1xf32>
      %35 = vector.shape_cast %34 : vector<1x128x1xf32> to vector<128x1xf32>
      %36 = vector.shape_cast %33 : vector<128x1xf32> to vector<1x128x1xf32>
      tpu.vector_store %arg6[%c0_19, %c0_20, %c0_21], %36 {strides = array<i32>} : memref<1x128x1xf32, #tpu.memory_space<vmem>>, vector<1x128x1xf32>,
    } else {
    }
    return
  }
  func.func @transform_0(%arg0: i32, %arg1: i32) -> (i32, i32, i32) {
    %c0_i32 = arith.constant 0 : i32
    %c0_i32_0 = arith.constant 0 : i32
    %c0_i32_1 = arith.constant 0 : i32
    return %arg0, %c0_i32, %c0_i32_0 : i32, i32, i32
  }
  func.func @transform_1(%arg0: i32, %arg1: i32) -> (i32, i32) {
    %c0_i32 = arith.constant 0 : i32
    %c0_i32_0 = arith.constant 0 : i32
    %c0_i32_1 = arith.constant 0 : i32
    return %c0_i32, %c0_i32_0 : i32, i32
  }
  func.func @transform_2(%arg0: i32, %arg1: i32) -> (i32, i32) {
    %c0_i32 = arith.constant 0 : i32
    %c0_i32_0 = arith.constant 0 : i32
    %c0_i32_1 = arith.constant 0 : i32
    return %c0_i32, %c0_i32_0 : i32, i32
  }
  func.func @transform_3(%arg0: i32, %arg1: i32) -> (i32, i32, i32) {
    %c0_i32 = arith.constant 0 : i32
    %c0_i32_0 = arith.constant 0 : i32
    %c0_i32_1 = arith.constant 0 : i32
    %c0_i32_2 = arith.constant 0 : i32
    return %c0_i32, %c0_i32_0, %c0_i32_1 : i32, i32, i32
  }
  func.func @transform_4(%arg0: i32, %arg1: i32) -> (i32, i32, i32) {
    %c0_i32 = arith.constant 0 : i32
    %c0_i32_0 = arith.constant 0 : i32
    %c0_i32_1 = arith.constant 0 : i32
    return %arg0, %c0_i32, %c0_i32_0 : i32, i32, i32
  }
}

module attributes {stable_mosaic.version = 11 : i64} {
  func.func @_k_project_kernel(%arg0: i32, %arg1: memref<1x128x256xf32, #tpu.memory_space<vmem>>, %arg2: memref<128x128xf32, #tpu.memory_space<vmem>>, %arg3: memref<128x1xf32, #tpu.memory_space<vmem>>, %arg4: memref<1x256x128xf32, #tpu.memory_space<vmem>>) attributes {dimension_semantics = [#tpu.dimension_semantics<parallel>], iteration_bounds = array<i64: 2>, scalar_prefetch = 0 : i64, scratch_operands = 0 : i64, tpu.core_type = #tpu.core_type<tc>, window_params = [{transform_indices = @transform_0, window_bounds = array<i64: 1, 128, 256>}, {pipeline_mode = #tpu.pipeline_mode<synchronous>, transform_indices = @transform_1, window_bounds = array<i64: 128, 128>}, {pipeline_mode = #tpu.pipeline_mode<synchronous>, transform_indices = @transform_2, window_bounds = array<i64: 128, 1>}, {transform_indices = @transform_3, window_bounds = array<i64: 1, 256, 128>}]} {
    %c0 = arith.constant 0 : index
    %c0_0 = arith.constant 0 : index
    %c0_1 = arith.constant 0 : index
    %0 = vector.load %arg1[%c0, %c0_0, %c0_1] : memref<1x128x256xf32, #tpu.memory_space<vmem>>, vector<1x128x256xf32>
    %1 = vector.shape_cast %0 : vector<1x128x256xf32> to vector<128x256xf32>
    %c0_2 = arith.constant 0 : index
    %c0_3 = arith.constant 0 : index
    %2 = vector.load %arg2[%c0_2, %c0_3] : memref<128x128xf32, #tpu.memory_space<vmem>>, vector<128x128xf32>
    %cst = arith.constant dense<0.000000e+00> : vector<128x256xf32>
    %3 = tpu.matmul %2, %1, %cst {dimension_numbers = #tpu.dot_dimension_numbers<[1], [0], [0], [1], [0, 0, 1, 1], [], []>} : vector<128x128xf32>, vector<128x256xf32>, vector<128x256xf32> -> vector<128x256xf32>
    %c0_4 = arith.constant 0 : index
    %c0_5 = arith.constant 0 : index
    %4 = vector.load %arg3[%c0_4, %c0_5] : memref<128x1xf32, #tpu.memory_space<vmem>>, vector<128x1xf32>
    %5 = vector.broadcast %4 : vector<128x1xf32> to vector<128x256xf32>
    %6 = arith.addf %3, %5 : vector<128x256xf32>
    %7 = tpu.transpose %6, [1, 0] : vector<128x256xf32> -> vector<256x128xf32>
    %c0_6 = arith.constant 0 : index
    %c0_7 = arith.constant 0 : index
    %c0_8 = arith.constant 0 : index
    %8 = vector.load %arg4[%c0_6, %c0_7, %c0_8] : memref<1x256x128xf32, #tpu.memory_space<vmem>>, vector<1x256x128xf32>
    %9 = vector.shape_cast %8 : vector<1x256x128xf32> to vector<256x128xf32>
    %10 = vector.shape_cast %7 : vector<256x128xf32> to vector<1x256x128xf32>
    tpu.vector_store %arg4[%c0_6, %c0_7, %c0_8], %10 {strides = array<i32>} : memref<1x256x128xf32, #tpu.memory_space<vmem>>, vector<1x256x128xf32>,
    return
  }
  func.func @transform_0(%arg0: i32) -> (i32, i32, i32) {
    %c0_i32 = arith.constant 0 : i32
    %c0_i32_0 = arith.constant 0 : i32
    %c0_i32_1 = arith.constant 0 : i32
    return %arg0, %c0_i32, %c0_i32_0 : i32, i32, i32
  }
  func.func @transform_1(%arg0: i32) -> (i32, i32) {
    %c0_i32 = arith.constant 0 : i32
    %c0_i32_0 = arith.constant 0 : i32
    %c0_i32_1 = arith.constant 0 : i32
    return %c0_i32, %c0_i32_0 : i32, i32
  }
  func.func @transform_2(%arg0: i32) -> (i32, i32) {
    %c0_i32 = arith.constant 0 : i32
    %c0_i32_0 = arith.constant 0 : i32
    %c0_i32_1 = arith.constant 0 : i32
    return %c0_i32, %c0_i32_0 : i32, i32
  }
  func.func @transform_3(%arg0: i32) -> (i32, i32, i32) {
    %c0_i32 = arith.constant 0 : i32
    %c0_i32_0 = arith.constant 0 : i32
    %c0_i32_1 = arith.constant 0 : i32
    return %arg0, %c0_i32, %c0_i32_0 : i32, i32, i32
  }
}

</mosaic_0001>

<llo_original>
// kernel: coatt_layer.2
$region0: #{coatt_layer.2}
  #allocation0 [shape = 'u32[]', space=smem, size = 0x4, offset = 0x4, fixed_abs, tag = 'smem constant byte address 0x4 - core index']
  #allocation1 [shape = 'u32[144,128]{1,0:T(1,128)}', space=vmem, size = 0x12000, scoped, tag = 'internal scratch']
  %s0 = inlined_call_operand.vmem [shape: f32[2,128,256], index: 0, kind: input, shape index: {}]
  %s1 = inlined_call_operand.vmem [shape: f32[128,128], index: 1, kind: input, shape index: {}]
  %s2 = inlined_call_operand.vmem [shape: f32[128,1], index: 2, kind: input, shape index: {}]
  %s3 = inlined_call_operand.vmem [shape: f32[2,256,128], index: 3, kind: output, shape index: {}]
  %s4 = sld [smem:[#allocation0]]
  $region45: #{coatt_layer.2} parent=0
    _
  %s6 = ssub.s32 1, %s4
  %s7 = scalar_select 0, %s6, %s4
  loop: start=0, step=1, limit=4
  $region2: #{coatt_layer.2} parent=0 // loop_pre_header
    _
  $region3: #{coatt_layer.2} parent=0 // loop_header
    %s9 = sphi 0, %s13
    %p10 = scmp.ge.s32.totalorder %s9, 4
    %s19 = sphi 0, %s21
    %s22 = sphi 0, %s19
    %s23 = sphi 0, %s22
    %s39 = sphi 0, %s23
    %s43 = sphi 0, %s43
    %s45 = sphi 0, %s43
    %s46 = sphi 0, %s45
    %s60 = sphi 0, %s46
    %s64 = sphi 0, %s64
    %s66 = sphi 0, %s64
    %s67 = sphi 0, %s66
    %s81 = sphi 0, %s67
    %s87 = sphi 0, %s89
    %s90 = sphi 0, %s87
    %s91 = sphi 0, %s90
    %s107 = sphi 0, %s91
  $region4: #{coatt_layer.2} parent=0 // loop_header_branch
    %12 = sbr.rel (%p10) target = $region8
  $region5: #{coatt_layer.2} parent=0 // loop_body
    %s14 = ssub.s32 %s9, 1
    %s15 = ssub.s32 %s9, 2
    %s16 = sadd.s32 %s9, 1
    %s17 = ssub.s32 %s9, %s16
    %p18 = scmp.eq.s32.totalorder %s17, 0
    %s20 = sadd.s32 %s19, 1
    %s21 = scalar_select %p18, %s19, %s20
    %p24 = pneg %p18
    %p25 = scmp.eq.s32.totalorder %s9, 1
    %p26 = por %p24, %p25
    %p27 = scmp.ne.s32.totalorder %s19, %s22
    %p28 = scmp.eq.s32.totalorder %s9, 0
    %p29 = por %p27, %p28
    %p30 = scmp.ne.s32.totalorder %s19, %s22
    %p31 = scmp.eq.s32.totalorder %s14, 1
    %p32 = por %p30, %p31
    %p33 = scmp.ne.s32.totalorder %s22, %s23
    %p34 = scmp.eq.s32.totalorder %s14, 0
    %p35 = por %p33, %p34
    %p36 = scmp.ne.s32.totalorder %s22, %s23
    %p37 = scmp.eq.s32.totalorder %s15, 1
    %p38 = por %p36, %p37
    %p40 = scmp.ne.s32.totalorder %s23, %s39
    %p41 = scmp.eq.s32.totalorder %s15, 0
    %p42 = por %p40, %p41
    %s44 = sadd.s32 %s43, 1
    %p47 = scmp.eq.s32.totalorder %s9, 1
    %p48 = scmp.ne.s32.totalorder %s43, %s45
    %p49 = scmp.eq.s32.totalorder %s9, 0
    %p50 = por %p48, %p49
    %p51 = scmp.ne.s32.totalorder %s43, %s45
    %p52 = scmp.eq.s32.totalorder %s14, 1
    %p53 = por %p51, %p52
    %p54 = scmp.ne.s32.totalorder %s45, %s46
    %p55 = scmp.eq.s32.totalorder %s14, 0
    %p56 = por %p54, %p55
    %p57 = scmp.ne.s32.totalorder %s45, %s46
    %p58 = scmp.eq.s32.totalorder %s15, 1
    %p59 = por %p57, %p58
    %p61 = scmp.ne.s32.totalorder %s46, %s60
    %p62 = scmp.eq.s32.totalorder %s15, 0
    %p63 = por %p61, %p62
    %s65 = sadd.s32 %s64, 1
    %p68 = scmp.eq.s32.totalorder %s9, 1
    %p69 = scmp.ne.s32.totalorder %s64, %s66
    %p70 = scmp.eq.s32.totalorder %s9, 0
    %p71 = por %p69, %p70
    %p72 = scmp.ne.s32.totalorder %s64, %s66
    %p73 = scmp.eq.s32.totalorder %s14, 1
    %p74 = por %p72, %p73
    %p75 = scmp.ne.s32.totalorder %s66, %s67
    %p76 = scmp.eq.s32.totalorder %s14, 0
    %p77 = por %p75, %p76
    %p78 = scmp.ne.s32.totalorder %s66, %s67
    %p79 = scmp.eq.s32.totalorder %s15, 1
    %p80 = por %p78, %p79
    %p82 = scmp.ne.s32.totalorder %s67, %s81
    %p83 = scmp.eq.s32.totalorder %s15, 0
    %p84 = por %p82, %p83
    %s85 = ssub.s32 %s9, %s16
    %p86 = scmp.eq.s32.totalorder %s85, 0
    %s88 = sadd.s32 %s87, 1
    %s89 = scalar_select %p86, %s87, %s88
    %p92 = pneg %p86
    %p93 = scmp.eq.s32.totalorder %s9, 1
    %p94 = por %p92, %p93
    %p95 = scmp.ne.s32.totalorder %s87, %s90
    %p96 = scmp.eq.s32.totalorder %s9, 0
    %p97 = por %p95, %p96
    %p98 = scmp.ne.s32.totalorder %s87, %s90
    %p99 = scmp.eq.s32.totalorder %s14, 1
    %p100 = por %p98, %p99
    %p101 = scmp.ne.s32.totalorder %s90, %s91
    %p102 = scmp.eq.s32.totalorder %s14, 0
    %p103 = por %p101, %p102
    %p104 = scmp.ne.s32.totalorder %s90, %s91
    %p105 = scmp.eq.s32.totalorder %s15, 1
    %p106 = por %p104, %p105
    %p108 = scmp.ne.s32.totalorder %s91, %s107
    %p109 = scmp.eq.s32.totalorder %s15, 0
    %p110 = por %p108, %p109
    %p111 = scmp.le.s32.totalorder 1, %s9
    %p112 = scmp.lt.s32.totalorder %s9, 3
    %p113 = pnand %p111, %p112
    %p114 = pneg %p113
    // Predicated region
    $region9: #{coatt_layer.2} parent=5 // pred_check
      _
    $region10: #{coatt_layer.2} parent=5 // pred_check_branch
      %116 = sbr.rel (%p113) target = $region12
    $region11: #{coatt_layer.2} parent=5 // pred_region
      %s117 = ssub.s32 %s9, 1
      // Predicated region
      $region13: #{coatt_layer.2} parent=11 // pred_check
        %p118 = pneg %p56
      $region14: #{coatt_layer.2} parent=11 // pred_check_branch
        %120 = sbr.rel (%p118) target = $region16
      $region15: #{coatt_layer.2} parent=11 // pred_region
        _
      $region16: #{coatt_layer.2} parent=11 // pred_fallthru
        _
      // Predicated region
      $region17: #{coatt_layer.2} parent=11 // pred_check
        %p121 = pneg %p77
      $region18: #{coatt_layer.2} parent=11 // pred_check_branch
        %123 = sbr.rel (%p121) target = $region20
      $region19: #{coatt_layer.2} parent=11 // pred_region
        _
      $region20: #{coatt_layer.2} parent=11 // pred_fallthru
        _
    $region12: #{coatt_layer.2} parent=5 // pred_fallthru
      _
    %p124 = scmp.lt.s32.totalorder %s9, 2
    // Predicated region
    $region21: #{coatt_layer.2} parent=5 // pred_check
      %p125 = pneg %p124
    $region22: #{coatt_layer.2} parent=5 // pred_check_branch
      %127 = sbr.rel (%p125) target = $region24
    $region23: #{coatt_layer.2} parent=5 // pred_region
      // Predicated region
      $region25: #{coatt_layer.2} parent=23 // pred_check
        %p128 = pneg %p29
      $region26: #{coatt_layer.2} parent=23 // pred_check_branch
        %130 = sbr.rel (%p128) target = $region28
      $region27: #{coatt_layer.2} parent=23 // pred_region
        %p131 = scmp.lt.s32.totalorder %s9, 1
        %s132 = scalar_select %p131, %s9, 1
        %s133 = smul.addr %s132, 32
        %s134 = smul.addr %s133, 8
        %s135 = scalar_lea.vmem %s0, %s134
      $region28: #{coatt_layer.2} parent=23 // pred_fallthru
        _
    $region24: #{coatt_layer.2} parent=5 // pred_fallthru
      _
    %p136 = scmp.le.s32.totalorder 1, %s9
    %p137 = scmp.lt.s32.totalorder %s9, 3
    %p138 = pnand %p136, %p137
    %p139 = pneg %p138
    // Predicated region
    $region29: #{coatt_layer.2} parent=5 // pred_check
      _
    $region30: #{coatt_layer.2} parent=5 // pred_check_branch
      %141 = sbr.rel (%p138) target = $region32
    $region31: #{coatt_layer.2} parent=5 // pred_region
      %s142 = ssub.s32 %s9, 1
      %p143 = scmp.lt.s32.totalorder %s14, 1
      %s144 = scalar_select %p143, %s14, 1
      %s145 = smul.addr %s144, 32
      %s146 = smul.addr %s145, 8
      %s147 = scalar_lea.vmem %s0, %s146
      %p148 = pneg %p35
      %p149 = pneg %p32
      %p150 = pneg %p56
      %p151 = pneg %p53
      %p152 = pneg %p77
      %p153 = pneg %p74
      %p154 = pneg %p103
      %p155 = pneg %p100
      %p156 = scmp.lt.s32.totalorder %s14, 1
      %s157 = scalar_select %p156, %s14, 1
      %s158 = smul.addr %s157, 32
      %s159 = smul.addr %s158, 8
      %s160 = scalar_lea.vmem %s3, %s159
      %p161 = scmp.lt.s32.totalorder %s14, 1
      %s162 = scalar_select %p161, %s14, 1
      %s163 = smul.addr %s162, 32
      %s164 = smul.addr %s163, 8
      %s165 = scalar_lea.vmem %s0, %s164
      %p166 = scmp.lt.s32.totalorder %s14, 1
      %s167 = scalar_select %p166, %s14, 1
      %s168 = smul.addr %s167, 32
      %s169 = smul.addr %s168, 8
      %s170 = scalar_lea.vmem %s3, %s169
      %v171 = vld [vmem:[%s165] sm:$0xff]
      %v172 = vld [vmem:[%s165 + $0x8] sm:$0xff]
      %v173 = vld [vmem:[%s165 + $0x10] sm:$0xff]
      %v174 = vld [vmem:[%s165 + $0x18] sm:$0xff]
      %v175 = vld [vmem:[%s165 + $0x20] sm:$0xff]
      %v176 = vld [vmem:[%s165 + $0x28] sm:$0xff]
      %v177 = vld [vmem:[%s165 + $0x30] sm:$0xff]
      %v178 = vld [vmem:[%s165 + $0x38] sm:$0xff]
      %v179 = vld [vmem:[%s165 + $0x40] sm:$0xff]
      %v180 = vld [vmem:[%s165 + $0x48] sm:$0xff]
      %v181 = vld [vmem:[%s165 + $0x50] sm:$0xff]
      %v182 = vld [vmem:[%s165 + $0x58] sm:$0xff]
      %v183 = vld [vmem:[%s165 + $0x60] sm:$0xff]
      %v184 = vld [vmem:[%s165 + $0x68] sm:$0xff]
      %v185 = vld [vmem:[%s165 + $0x70] sm:$0xff]
      %v186 = vld [vmem:[%s165 + $0x78] sm:$0xff]
      %v187 = vld [vmem:[%s165 + $0x80] sm:$0xff]
      %v188 = vld [vmem:[%s165 + $0x88] sm:$0xff]
      %v189 = vld [vmem:[%s165 + $0x90] sm:$0xff]
      %v190 = vld [vmem:[%s165 + $0x98] sm:$0xff]
      %v191 = vld [vmem:[%s165 + $0xa0] sm:$0xff]
      %v192 = vld [vmem:[%s165 + $0xa8] sm:$0xff]
      %v193 = vld [vmem:[%s165 + $0xb0] sm:$0xff]
      %v194 = vld [vmem:[%s165 + $0xb8] sm:$0xff]
      %v195 = vld [vmem:[%s165 + $0xc0] sm:$0xff]
      %v196 = vld [vmem:[%s165 + $0xc8] sm:$0xff]
      %v197 = vld [vmem:[%s165 + $0xd0] sm:$0xff]
      %v198 = vld [vmem:[%s165 + $0xd8] sm:$0xff]
      %v199 = vld [vmem:[%s165 + $0xe0] sm:$0xff]
      %v200 = vld [vmem:[%s165 + $0xe8] sm:$0xff]
      %v201 = vld [vmem:[%s165 + $0xf0] sm:$0xff]
      %v202 = vld [vmem:[%s165 + $0xf8] sm:$0xff]
      %v203 = vld [vmem:[%s1] sm:$0xff]
      %v204 = vld [vmem:[%s1 + $0x8] sm:$0xff]
      %v205 = vld [vmem:[%s1 + $0x10] sm:$0xff]
      %v206 = vld [vmem:[%s1 + $0x18] sm:$0xff]
      %v207 = vld [vmem:[%s1 + $0x20] sm:$0xff]
      %v208 = vld [vmem:[%s1 + $0x28] sm:$0xff]
      %v209 = vld [vmem:[%s1 + $0x30] sm:$0xff]
      %v210 = vld [vmem:[%s1 + $0x38] sm:$0xff]
      %v211 = vld [vmem:[%s1 + $0x40] sm:$0xff]
      %v212 = vld [vmem:[%s1 + $0x48] sm:$0xff]
      %v213 = vld [vmem:[%s1 + $0x50] sm:$0xff]
      %v214 = vld [vmem:[%s1 + $0x58] sm:$0xff]
      %v215 = vld [vmem:[%s1 + $0x60] sm:$0xff]
      %v216 = vld [vmem:[%s1 + $0x68] sm:$0xff]
      %v217 = vld [vmem:[%s1 + $0x70] sm:$0xff]
      %v218 = vld [vmem:[%s1 + $0x78] sm:$0xff]
      %v219 = vld [vmem:[%s2] sm:$0xff]
      %v220 = vld [vmem:[%s2 + $0x8] sm:$0xff]
      %v221 = vld [vmem:[%s2 + $0x10] sm:$0xff]
      %v222 = vld [vmem:[%s2 + $0x18] sm:$0xff]
      %v223 = vld [vmem:[%s2 + $0x20] sm:$0xff]
      %v224 = vld [vmem:[%s2 + $0x28] sm:$0xff]
      %v225 = vld [vmem:[%s2 + $0x30] sm:$0xff]
      %v226 = vld [vmem:[%s2 + $0x38] sm:$0xff]
      %v227 = vld [vmem:[%s2 + $0x40] sm:$0xff]
      %v228 = vld [vmem:[%s2 + $0x48] sm:$0xff]
      %v229 = vld [vmem:[%s2 + $0x50] sm:$0xff]
      %v230 = vld [vmem:[%s2 + $0x58] sm:$0xff]
      %v231 = vld [vmem:[%s2 + $0x60] sm:$0xff]
      %v232 = vld [vmem:[%s2 + $0x68] sm:$0xff]
      %v233 = vld [vmem:[%s2 + $0x70] sm:$0xff]
      %v234 = vld [vmem:[%s2 + $0x78] sm:$0xff]
      %236 = vset.pattern.permute.xlu0 0
      %237 = vperm.xlu0 %236, %v219
      %v238 = vpop.permute.xlu0 %237
      %241 = vset.pattern.permute.xlu0 0
      %242 = vperm.xlu0 %241, %v220
      %v243 = vpop.permute.xlu0 %242
      %246 = vset.pattern.permute.xlu0 0
      %247 = vperm.xlu0 %246, %v221
      %v248 = vpop.permute.xlu0 %247
      %251 = vset.pattern.permute.xlu0 0
      %252 = vperm.xlu0 %251, %v222
      %v253 = vpop.permute.xlu0 %252
      %256 = vset.pattern.permute.xlu0 0
      %257 = vperm.xlu0 %256, %v223
      %v258 = vpop.permute.xlu0 %257
      %261 = vset.pattern.permute.xlu0 0
      %262 = vperm.xlu0 %261, %v224
      %v263 = vpop.permute.xlu0 %262
      %266 = vset.pattern.permute.xlu0 0
      %267 = vperm.xlu0 %266, %v225
      %v268 = vpop.permute.xlu0 %267
      %271 = vset.pattern.permute.xlu0 0
      %272 = vperm.xlu0 %271, %v226
      %v273 = vpop.permute.xlu0 %272
      %276 = vset.pattern.permute.xlu0 0
      %277 = vperm.xlu0 %276, %v227
      %v278 = vpop.permute.xlu0 %277
      %281 = vset.pattern.permute.xlu0 0
      %282 = vperm.xlu0 %281, %v228
      %v283 = vpop.permute.xlu0 %282
      %286 = vset.pattern.permute.xlu0 0
      %287 = vperm.xlu0 %286, %v229
      %v288 = vpop.permute.xlu0 %287
      %291 = vset.pattern.permute.xlu0 0
      %292 = vperm.xlu0 %291, %v230
      %v293 = vpop.permute.xlu0 %292
      %296 = vset.pattern.permute.xlu0 0
      %297 = vperm.xlu0 %296, %v231
      %v298 = vpop.permute.xlu0 %297
      %301 = vset.pattern.permute.xlu0 0
      %302 = vperm.xlu0 %301, %v232
      %v303 = vpop.permute.xlu0 %302
      %306 = vset.pattern.permute.xlu0 0
      %307 = vperm.xlu0 %306, %v233
      %v308 = vpop.permute.xlu0 %307
      %311 = vset.pattern.permute.xlu0 0
      %312 = vperm.xlu0 %311, %v234
      %v313 = vpop.permute.xlu0 %312
      %315 = vmatprep.subr.mxu0 %v172
      %316 = vmatpush1.msra.mxu0 %v171
      %317 = vmatprep.subr.mxu0 %v174
      %318 = vmatpush1.msra.mxu0 %v173
      %319 = vmatprep.subr.mxu0 %v176
      %320 = vmatpush1.msra.mxu0 %v175
      %321 = vmatprep.subr.mxu0 %v178
      %322 = vmatpush1.msra.mxu0 %v177
      %323 = vmatprep.subr.mxu0 %v180
      %324 = vmatpush1.msra.mxu0 %v179
      %325 = vmatprep.subr.mxu0 %v182
      %326 = vmatpush1.msra.mxu0 %v181
      %327 = vmatprep.subr.mxu0 %v184
      %328 = vmatpush1.msra.mxu0 %v183
      %329 = vmatprep.subr.mxu0 %v186
      %330 = vmatpush1.msra.mxu0 %v185
      %331 = vmatprep.subr.mxu0 %v188
      %332 = vmatpush1.msra.mxu0 %v187
      %333 = vmatprep.subr.mxu0 %v190
      %334 = vmatpush1.msra.mxu0 %v189
      %335 = vmatprep.subr.mxu0 %v192
      %336 = vmatpush1.msra.mxu0 %v191
      %337 = vmatprep.subr.mxu0 %v194
      %338 = vmatpush1.msra.mxu0 %v193
      %339 = vmatprep.subr.mxu0 %v196
      %340 = vmatpush1.msra.mxu0 %v195
      %341 = vmatprep.subr.mxu0 %v198
      %342 = vmatpush1.msra.mxu0 %v197
      %343 = vmatprep.subr.mxu0 %v200
      %344 = vmatpush1.msra.mxu0 %v199
      %345 = vmatprep.subr.mxu0 %v202
      %346 = vmatpush1.msra.mxu0 %v201
      %347 = vmatprep.subr.mxu0 0.0
      %348 = vmatpush1.msra.mxu0 0.0
      %349 = vmatprep.subr.mxu0 0.0
      %350 = vmatpush1.msra.mxu0 0.0
      %351 = vmatprep.subr.mxu0 0.0
      %352 = vmatpush1.msra.mxu0 0.0
      %353 = vmatprep.subr.mxu0 0.0
      %354 = vmatpush1.msra.mxu0 0.0
      %355 = vmatprep.subr.mxu0 0.0
      %356 = vmatpush1.msra.mxu0 0.0
      %357 = vmatprep.subr.mxu0 0.0
      %358 = vmatpush1.msra.mxu0 0.0
      %359 = vmatprep.subr.mxu0 0.0
      %360 = vmatpush1.msra.mxu0 0.0
      %361 = vmatprep.subr.mxu0 0.0
      %362 = vmatpush1.msra.mxu0 0.0
      %363 = vmatprep.subr.mxu0 0.0
      %364 = vmatpush1.msra.mxu0 0.0
      %365 = vmatprep.subr.mxu0 0.0
      %366 = vmatpush1.msra.mxu0 0.0
      %367 = vmatprep.subr.mxu0 0.0
      %368 = vmatpush1.msra.mxu0 0.0
      %369 = vmatprep.subr.mxu0 0.0
      %370 = vmatpush1.msra.mxu0 0.0
      %371 = vmatprep.subr.mxu0 0.0
      %372 = vmatpush1.msra.mxu0 0.0
      %373 = vmatprep.subr.mxu0 0.0
      %374 = vmatpush1.msra.mxu0 0.0
      %375 = vmatprep.subr.mxu0 0.0
      %376 = vmatpush1.msra.mxu0 0.0
      %377 = vmatprep.subr.mxu0 0.0
      %378 = vmatpush1.msra.mxu0 0.0
      %379 = vmatprep.mubr.f32.mxu0 0.0
      %380 = vmatmul.mubr.f32.gmra.mrb[0].mxu0 %v203
      %v381 = vpop.f32.mrb[0].mxu0
      %v382 = vadd.f32 %v238, %v381
      %v383 = vpop.f32.mrb[0].mxu0
      %v384 = vadd.f32 %v238, %v383
      %385 = vmatprep.mubr.f32.mxu0 0.0
      %386 = vmatmul.mubr.f32.gmra.mrb[0].mxu0 %v204
      %v387 = vpop.f32.mrb[0].mxu0
      %v388 = vadd.f32 %v243, %v387
      %v389 = vpop.f32.mrb[0].mxu0
      %v390 = vadd.f32 %v243, %v389
      %391 = vmatprep.mubr.f32.mxu0 0.0
      %392 = vmatmul.mubr.f32.gmra.mrb[0].mxu0 %v205
      %v393 = vpop.f32.mrb[0].mxu0
      %v394 = vadd.f32 %v248, %v393
      %v395 = vpop.f32.mrb[0].mxu0
      %v396 = vadd.f32 %v248, %v395
      %397 = vmatprep.mubr.f32.mxu0 0.0
      %398 = vmatmul.mubr.f32.gmra.mrb[0].mxu0 %v206
      %v399 = vpop.f32.mrb[0].mxu0
      %v400 = vadd.f32 %v253, %v399
      %v401 = vpop.f32.mrb[0].mxu0
      %v402 = vadd.f32 %v253, %v401
      %403 = vmatprep.mubr.f32.mxu0 0.0
      %404 = vmatmul.mubr.f32.gmra.mrb[0].mxu0 %v207
      %v405 = vpop.f32.mrb[0].mxu0
      %v406 = vadd.f32 %v258, %v405
      %v407 = vpop.f32.mrb[0].mxu0
      %v408 = vadd.f32 %v258, %v407
      %409 = vmatprep.mubr.f32.mxu0 0.0
      %410 = vmatmul.mubr.f32.gmra.mrb[0].mxu0 %v208
      %v411 = vpop.f32.mrb[0].mxu0
      %v412 = vadd.f32 %v263, %v411
      %v413 = vpop.f32.mrb[0].mxu0
      %v414 = vadd.f32 %v263, %v413
      %415 = vmatprep.mubr.f32.mxu0 0.0
      %416 = vmatmul.mubr.f32.gmra.mrb[0].mxu0 %v209
      %v417 = vpop.f32.mrb[0].mxu0
      %v418 = vadd.f32 %v268, %v417
      %v419 = vpop.f32.mrb[0].mxu0
      %v420 = vadd.f32 %v268, %v419
      %421 = vmatprep.mubr.f32.mxu0 0.0
      %422 = vmatmul.mubr.f32.gmra.mrb[0].mxu0 %v210
      %v423 = vpop.f32.mrb[0].mxu0
      %v424 = vadd.f32 %v273, %v423
      %v425 = vpop.f32.mrb[0].mxu0
      %v426 = vadd.f32 %v273, %v425
      %427 = vmatprep.mubr.f32.mxu0 0.0
      %428 = vmatmul.mubr.f32.gmra.mrb[0].mxu0 %v211
      %v429 = vpop.f32.mrb[0].mxu0
      %v430 = vadd.f32 %v278, %v429
      %v431 = vpop.f32.mrb[0].mxu0
      %v432 = vadd.f32 %v278, %v431
      %433 = vmatprep.mubr.f32.mxu0 0.0
      %434 = vmatmul.mubr.f32.gmra.mrb[0].mxu0 %v212
      %v435 = vpop.f32.mrb[0].mxu0
      %v436 = vadd.f32 %v283, %v435
      %v437 = vpop.f32.mrb[0].mxu0
      %v438 = vadd.f32 %v283, %v437
      %439 = vmatprep.mubr.f32.mxu0 0.0
      %440 = vmatmul.mubr.f32.gmra.mrb[0].mxu0 %v213
      %v441 = vpop.f32.mrb[0].mxu0
      %v442 = vadd.f32 %v288, %v441
      %v443 = vpop.f32.mrb[0].mxu0
      %v444 = vadd.f32 %v288, %v443
      %445 = vmatprep.mubr.f32.mxu0 0.0
      %446 = vmatmul.mubr.f32.gmra.mrb[0].mxu0 %v214
      %v447 = vpop.f32.mrb[0].mxu0
      %v448 = vadd.f32 %v293, %v447
      %v449 = vpop.f32.mrb[0].mxu0
      %v450 = vadd.f32 %v293, %v449
      %451 = vmatprep.mubr.f32.mxu0 0.0
      %452 = vmatmul.mubr.f32.gmra.mrb[0].mxu0 %v215
      %v453 = vpop.f32.mrb[0].mxu0
      %v454 = vadd.f32 %v298, %v453
      %v455 = vpop.f32.mrb[0].mxu0
      %v456 = vadd.f32 %v298, %v455
      %457 = vmatprep.mubr.f32.mxu0 0.0
      %458 = vmatmul.mubr.f32.gmra.mrb[0].mxu0 %v216
      %v459 = vpop.f32.mrb[0].mxu0
      %v460 = vadd.f32 %v303, %v459
      %v461 = vpop.f32.mrb[0].mxu0
      %v462 = vadd.f32 %v303, %v461
      %463 = vmatprep.mubr.f32.mxu0 0.0
      %464 = vmatmul.mubr.f32.gmra.mrb[0].mxu0 %v217
      %v465 = vpop.f32.mrb[0].mxu0
      %v466 = vadd.f32 %v308, %v465
      %v467 = vpop.f32.mrb[0].mxu0
      %v468 = vadd.f32 %v308, %v467
      %469 = vmatprep.mubr.f32.mxu0 0.0
      %470 = vmatmul.mubr.f32.gmra.mrb[0].mxu0 %v218
      %v471 = vpop.f32.mrb[0].mxu0
      %v472 = vadd.f32 %v313, %v471
      %v473 = vpop.f32.mrb[0].mxu0
      %v474 = vadd.f32 %v313, %v473
      %475 = vdwg.mxu0
      %476 = vxpose.xlu0.b32.start [1/16] %v382, 128
      %477 = vxpose.xlu0.b32.cont [2/16] %v388, 128
      %478 = vxpose.xlu0.b32.cont [3/16] %v394, 128
      %479 = vxpose.xlu0.b32.cont [4/16] %v400, 128
      %480 = vxpose.xlu0.b32.cont [5/16] %v406, 128
      %481 = vxpose.xlu0.b32.cont [6/16] %v412, 128
      %482 = vxpose.xlu0.b32.cont [7/16] %v418, 128
      %483 = vxpose.xlu0.b32.cont [8/16] %v424, 128
      %484 = vxpose.xlu0.b32.cont [9/16] %v430, 128
      %485 = vxpose.xlu0.b32.cont [10/16] %v436, 128
      %486 = vxpose.xlu0.b32.cont [11/16] %v442, 128
      %487 = vxpose.xlu0.b32.cont [12/16] %v448, 128
      %488 = vxpose.xlu0.b32.cont [13/16] %v454, 128
      %489 = vxpose.xlu0.b32.cont [14/16] %v460, 128
      %490 = vxpose.xlu0.b32.cont [15/16] %v466, 128
      %491 = vxpose.xlu0.b32.end [16/16] %v472, 128
      %v492 = vpop.trf.xlu0
      %v493 = vpop.trf.xlu0
      %v494 = vpop.trf.xlu0
      %v495 = vpop.trf.xlu0
      %v496 = vpop.trf.xlu0
      %v497 = vpop.trf.xlu0
      %v498 = vpop.trf.xlu0
      %v499 = vpop.trf.xlu0
      %v500 = vpop.trf.xlu0
      %v501 = vpop.trf.xlu0
      %v502 = vpop.trf.xlu0
      %v503 = vpop.trf.xlu0
      %v504 = vpop.trf.xlu0
      %v505 = vpop.trf.xlu0
      %v506 = vpop.trf.xlu0
      %v507 = vpop.trf.xlu0
      %508 = vxpose.xlu0.b32.start [1/16] %v384, 128
      %509 = vxpose.xlu0.b32.cont [2/16] %v390, 128
      %510 = vxpose.xlu0.b32.cont [3/16] %v396, 128
      %511 = vxpose.xlu0.b32.cont [4/16] %v402, 128
      %512 = vxpose.xlu0.b32.cont [5/16] %v408, 128
      %513 = vxpose.xlu0.b32.cont [6/16] %v414, 128
      %514 = vxpose.xlu0.b32.cont [7/16] %v420, 128
      %515 = vxpose.xlu0.b32.cont [8/16] %v426, 128
      %516 = vxpose.xlu0.b32.cont [9/16] %v432, 128
      %517 = vxpose.xlu0.b32.cont [10/16] %v438, 128
      %518 = vxpose.xlu0.b32.cont [11/16] %v444, 128
      %519 = vxpose.xlu0.b32.cont [12/16] %v450, 128
      %520 = vxpose.xlu0.b32.cont [13/16] %v456, 128
      %521 = vxpose.xlu0.b32.cont [14/16] %v462, 128
      %522 = vxpose.xlu0.b32.cont [15/16] %v468, 128
      %523 = vxpose.xlu0.b32.end [16/16] %v474, 128
      %v524 = vpop.trf.xlu0
      %v525 = vpop.trf.xlu0
      %v526 = vpop.trf.xlu0
      %v527 = vpop.trf.xlu0
      %v528 = vpop.trf.xlu0
      %v529 = vpop.trf.xlu0
      %v530 = vpop.trf.xlu0
      %v531 = vpop.trf.xlu0
      %v532 = vpop.trf.xlu0
      %v533 = vpop.trf.xlu0
      %v534 = vpop.trf.xlu0
      %v535 = vpop.trf.xlu0
      %v536 = vpop.trf.xlu0
      %v537 = vpop.trf.xlu0
      %v538 = vpop.trf.xlu0
      %v539 = vpop.trf.xlu0
      %540 = vst [vmem:[%s170] sm:$0xff] %v492
      %541 = vst [vmem:[%s170 + $0x8] sm:$0xff] %v493
      %542 = vst [vmem:[%s170 + $0x10] sm:$0xff] %v494
      %543 = vst [vmem:[%s170 + $0x18] sm:$0xff] %v495
      %544 = vst [vmem:[%s170 + $0x20] sm:$0xff] %v496
      %545 = vst [vmem:[%s170 + $0x28] sm:$0xff] %v497
      %546 = vst [vmem:[%s170 + $0x30] sm:$0xff] %v498
      %547 = vst [vmem:[%s170 + $0x38] sm:$0xff] %v499
      %548 = vst [vmem:[%s170 + $0x40] sm:$0xff] %v500
      %549 = vst [vmem:[%s170 + $0x48] sm:$0xff] %v501
      %550 = vst [vmem:[%s170 + $0x50] sm:$0xff] %v502
      %551 = vst [vmem:[%s170 + $0x58] sm:$0xff] %v503
      %552 = vst [vmem:[%s170 + $0x60] sm:$0xff] %v504
      %553 = vst [vmem:[%s170 + $0x68] sm:$0xff] %v505
      %554 = vst [vmem:[%s170 + $0x70] sm:$0xff] %v506
      %555 = vst [vmem:[%s170 + $0x78] sm:$0xff] %v507
      %556 = vst [vmem:[%s170 + $0x80] sm:$0xff] %v524
      %557 = vst [vmem:[%s170 + $0x88] sm:$0xff] %v525
      %558 = vst [vmem:[%s170 + $0x90] sm:$0xff] %v526
      %559 = vst [vmem:[%s170 + $0x98] sm:$0xff] %v527
      %560 = vst [vmem:[%s170 + $0xa0] sm:$0xff] %v528
      %561 = vst [vmem:[%s170 + $0xa8] sm:$0xff] %v529
      %562 = vst [vmem:[%s170 + $0xb0] sm:$0xff] %v530
      %563 = vst [vmem:[%s170 + $0xb8] sm:$0xff] %v531
      %564 = vst [vmem:[%s170 + $0xc0] sm:$0xff] %v532
      %565 = vst [vmem:[%s170 + $0xc8] sm:$0xff] %v533
      %566 = vst [vmem:[%s170 + $0xd0] sm:$0xff] %v534
      %567 = vst [vmem:[%s170 + $0xd8] sm:$0xff] %v535
      %568 = vst [vmem:[%s170 + $0xe0] sm:$0xff] %v536
      %569 = vst [vmem:[%s170 + $0xe8] sm:$0xff] %v537
      %570 = vst [vmem:[%s170 + $0xf0] sm:$0xff] %v538
      %571 = vst [vmem:[%s170 + $0xf8] sm:$0xff] %v539
      %p572 = scmp.lt.s32.totalorder %s14, 1
      %s573 = scalar_select %p572, %s14, 1
      %s574 = smul.addr %s573, 32
      %s575 = smul.addr %s574, 8
      %s576 = scalar_lea.vmem %s3, %s575
      // Predicated region
      $region33: #{coatt_layer.2} parent=31 // pred_check
        %p577 = pneg %p100
      $region34: #{coatt_layer.2} parent=31 // pred_check_branch
        %579 = sbr.rel (%p577) target = $region36
      $region35: #{coatt_layer.2} parent=31 // pred_region
        _
      $region36: #{coatt_layer.2} parent=31 // pred_fallthru
        _
    $region32: #{coatt_layer.2} parent=5 // pred_fallthru
      _
    %p580 = scmp.le.s32.totalorder 2, %s9
    // Predicated region
    $region37: #{coatt_layer.2} parent=5 // pred_check
      %p581 = pneg %p580
    $region38: #{coatt_layer.2} parent=5 // pred_check_branch
      %583 = sbr.rel (%p581) target = $region40
    $region39: #{coatt_layer.2} parent=5 // pred_region
      %s584 = ssub.s32 %s9, 2
      // Predicated region
      $region41: #{coatt_layer.2} parent=39 // pred_check
        %p585 = pneg %p106
      $region42: #{coatt_layer.2} parent=39 // pred_check_branch
        %587 = sbr.rel (%p585) target = $region44
      $region43: #{coatt_layer.2} parent=39 // pred_region
        %p588 = scmp.lt.s32.totalorder %s15, 1
        %s589 = scalar_select %p588, %s15, 1
        %s590 = smul.addr %s589, 32
        %s591 = smul.addr %s590, 8
        %s592 = scalar_lea.vmem %s3, %s591
      $region44: #{coatt_layer.2} parent=39 // pred_fallthru
        _
    $region40: #{coatt_layer.2} parent=5 // pred_fallthru
      _
  $region6: #{coatt_layer.2} parent=0 // loop_footer
    %s13 = sadd.s32 1, %s9
  $region7: #{coatt_layer.2} parent=0 // loop_footer_branch
    %8 = sbr.rel target = $region3
  $region8: #{coatt_layer.2} parent=0 // loop_exit
    _

// kernel: coatt_layer.3
$region0: #{coatt_layer.3}
  #allocation0 [shape = 'u32[]', space=smem, size = 0x4, offset = 0x4, fixed_abs, tag = 'smem constant byte address 0x4 - core index']
  #allocation1 [shape = 'u32[144,128]{1,0:T(1,128)}', space=vmem, size = 0x12000, scoped, tag = 'internal scratch']
  #allocation2 [shape = 'f32[128,256]{1,0:T(8,128)}', space=vmem, size = 0x20000, scoped, tag = 'scratch operand']
  #allocation3 [shape = 'f32[1,256]{1,0:T(1,128)}', space=vmem, size = 0x400, scoped, tag = 'scratch operand']
  %s0 = inlined_call_operand.vmem [shape: f32[2,128,256], index: 0, kind: input, shape index: {}]
  %s1 = inlined_call_operand.vmem [shape: f32[128,128], index: 1, kind: input, shape index: {}]
  %s2 = inlined_call_operand.vmem [shape: f32[128,1], index: 2, kind: input, shape index: {}]
  %s3 = inlined_call_operand.vmem [shape: f32[2,256,128], index: 3, kind: input, shape index: {}]
  %s4 = inlined_call_operand.vmem [shape: f32[2,128,1], index: 4, kind: output, shape index: {}]
  %s5 = sld [smem:[#allocation0]]
  $region57: #{coatt_layer.3} parent=0
    _
  %s7 = ssub.s32 1, %s5
  %s8 = scalar_select 0, %s7, %s5
  loop: start=0, step=1, limit=6
  $region2: #{coatt_layer.3} parent=0 // loop_pre_header
    _
  $region3: #{coatt_layer.3} parent=0 // loop_header
    %s10 = sphi 0, %s14
    %p11 = scmp.ge.s32.totalorder %s10, 6
    %s17 = sphi 0, %s29
    %s18 = sphi 0, %s25
    %s19 = sphi 0, %s17
    %s20 = sphi 0, %s18
    %s21 = sphi 0, %s19
    %s22 = sphi 0, %s20
    %s32 = sphi 0, %s34
    %s35 = sphi 0, %s32
    %s36 = sphi 0, %s35
    %s52 = sphi 0, %s36
    %s56 = sphi 0, %s56
    %s58 = sphi 0, %s56
    %s59 = sphi 0, %s58
    %s73 = sphi 0, %s59
    %s77 = sphi 0, %s77
    %s79 = sphi 0, %s77
    %s80 = sphi 0, %s79
    %s94 = sphi 0, %s80
    %s98 = sphi 0, %s98
    %s100 = sphi 0, %s98
    %s101 = sphi 0, %s100
    %s115 = sphi 0, %s101
    %s121 = sphi 0, %s123
    %s124 = sphi 0, %s121
    %s125 = sphi 0, %s124
    %s141 = sphi 0, %s125
  $region4: #{coatt_layer.3} parent=0 // loop_header_branch
    %13 = sbr.rel (%p11) target = $region8
  $region5: #{coatt_layer.3} parent=0 // loop_body
    %s15 = ssub.s32 %s10, 1
    %s16 = ssub.s32 %s10, 2
    %s23 = sadd.s32 1, %s18
    %p24 = scmp.ge.s32.totalorder %s23, 2
    %s25 = scalar_select %p24, 0, %s23
    %s26 = sadd.s32 1, %s17
    %s27 = scalar_select %p24, %s26, %s17
    %p28 = scmp.ge.s32.totalorder %s27, 2
    %s29 = scalar_select %p28, 0, %s27
    %s30 = ssub.s32 %s17, %s29
    %p31 = scmp.eq.s32.totalorder %s30, 0
    %s33 = sadd.s32 %s32, 1
    %s34 = scalar_select %p31, %s32, %s33
    %p37 = pneg %p31
    %p38 = scmp.eq.s32.totalorder %s10, 3
    %p39 = por %p37, %p38
    %p40 = scmp.ne.s32.totalorder %s32, %s35
    %p41 = scmp.eq.s32.totalorder %s10, 0
    %p42 = por %p40, %p41
    %p43 = scmp.ne.s32.totalorder %s32, %s35
    %p44 = scmp.eq.s32.totalorder %s15, 3
    %p45 = por %p43, %p44
    %p46 = scmp.ne.s32.totalorder %s35, %s36
    %p47 = scmp.eq.s32.totalorder %s15, 0
    %p48 = por %p46, %p47
    %p49 = scmp.ne.s32.totalorder %s35, %s36
    %p50 = scmp.eq.s32.totalorder %s16, 3
    %p51 = por %p49, %p50
    %p53 = scmp.ne.s32.totalorder %s36, %s52
    %p54 = scmp.eq.s32.totalorder %s16, 0
    %p55 = por %p53, %p54
    %s57 = sadd.s32 %s56, 1
    %p60 = scmp.eq.s32.totalorder %s10, 3
    %p61 = scmp.ne.s32.totalorder %s56, %s58
    %p62 = scmp.eq.s32.totalorder %s10, 0
    %p63 = por %p61, %p62
    %p64 = scmp.ne.s32.totalorder %s56, %s58
    %p65 = scmp.eq.s32.totalorder %s15, 3
    %p66 = por %p64, %p65
    %p67 = scmp.ne.s32.totalorder %s58, %s59
    %p68 = scmp.eq.s32.totalorder %s15, 0
    %p69 = por %p67, %p68
    %p70 = scmp.ne.s32.totalorder %s58, %s59
    %p71 = scmp.eq.s32.totalorder %s16, 3
    %p72 = por %p70, %p71
    %p74 = scmp.ne.s32.totalorder %s59, %s73
    %p75 = scmp.eq.s32.totalorder %s16, 0
    %p76 = por %p74, %p75
    %s78 = sadd.s32 %s77, 1
    %p81 = scmp.eq.s32.totalorder %s10, 3
    %p82 = scmp.ne.s32.totalorder %s77, %s79
    %p83 = scmp.eq.s32.totalorder %s10, 0
    %p84 = por %p82, %p83
    %p85 = scmp.ne.s32.totalorder %s77, %s79
    %p86 = scmp.eq.s32.totalorder %s15, 3
    %p87 = por %p85, %p86
    %p88 = scmp.ne.s32.totalorder %s79, %s80
    %p89 = scmp.eq.s32.totalorder %s15, 0
    %p90 = por %p88, %p89
    %p91 = scmp.ne.s32.totalorder %s79, %s80
    %p92 = scmp.eq.s32.totalorder %s16, 3
    %p93 = por %p91, %p92
    %p95 = scmp.ne.s32.totalorder %s80, %s94
    %p96 = scmp.eq.s32.totalorder %s16, 0
    %p97 = por %p95, %p96
    %s99 = sadd.s32 %s98, 1
    %p102 = scmp.eq.s32.totalorder %s10, 3
    %p103 = scmp.ne.s32.totalorder %s98, %s100
    %p104 = scmp.eq.s32.totalorder %s10, 0
    %p105 = por %p103, %p104
    %p106 = scmp.ne.s32.totalorder %s98, %s100
    %p107 = scmp.eq.s32.totalorder %s15, 3
    %p108 = por %p106, %p107
    %p109 = scmp.ne.s32.totalorder %s100, %s101
    %p110 = scmp.eq.s32.totalorder %s15, 0
    %p111 = por %p109, %p110
    %p112 = scmp.ne.s32.totalorder %s100, %s101
    %p113 = scmp.eq.s32.totalorder %s16, 3
    %p114 = por %p112, %p113
    %p116 = scmp.ne.s32.totalorder %s101, %s115
    %p117 = scmp.eq.s32.totalorder %s16, 0
    %p118 = por %p116, %p117
    %s119 = ssub.s32 %s17, %s29
    %p120 = scmp.eq.s32.totalorder %s119, 0
    %s122 = sadd.s32 %s121, 1
    %s123 = scalar_select %p120, %s121, %s122
    %p126 = pneg %p120
    %p127 = scmp.eq.s32.totalorder %s10, 3
    %p128 = por %p126, %p127
    %p129 = scmp.ne.s32.totalorder %s121, %s124
    %p130 = scmp.eq.s32.totalorder %s10, 0
    %p131 = por %p129, %p130
    %p132 = scmp.ne.s32.totalorder %s121, %s124
    %p133 = scmp.eq.s32.totalorder %s15, 3
    %p134 = por %p132, %p133
    %p135 = scmp.ne.s32.totalorder %s124, %s125
    %p136 = scmp.eq.s32.totalorder %s15, 0
    %p137 = por %p135, %p136
    %p138 = scmp.ne.s32.totalorder %s124, %s125
    %p139 = scmp.eq.s32.totalorder %s16, 3
    %p140 = por %p138, %p139
    %p142 = scmp.ne.s32.totalorder %s125, %s141
    %p143 = scmp.eq.s32.totalorder %s16, 0
    %p144 = por %p142, %p143
    %p145 = scmp.le.s32.totalorder 1, %s10
    %p146 = scmp.lt.s32.totalorder %s10, 5
    %p147 = pnand %p145, %p146
    %p148 = pneg %p147
    // Predicated region
    $region9: #{coatt_layer.3} parent=5 // pred_check
      _
    $region10: #{coatt_layer.3} parent=5 // pred_check_branch
      %150 = sbr.rel (%p147) target = $region12
    $region11: #{coatt_layer.3} parent=5 // pred_region
      %s151 = ssub.s32 %s10, 1
      // Predicated region
      $region13: #{coatt_layer.3} parent=11 // pred_check
        %p152 = pneg %p69
      $region14: #{coatt_layer.3} parent=11 // pred_check_branch
        %154 = sbr.rel (%p152) target = $region16
      $region15: #{coatt_layer.3} parent=11 // pred_region
        _
      $region16: #{coatt_layer.3} parent=11 // pred_fallthru
        _
      // Predicated region
      $region17: #{coatt_layer.3} parent=11 // pred_check
        %p155 = pneg %p90
      $region18: #{coatt_layer.3} parent=11 // pred_check_branch
        %157 = sbr.rel (%p155) target = $region20
      $region19: #{coatt_layer.3} parent=11 // pred_region
        _
      $region20: #{coatt_layer.3} parent=11 // pred_fallthru
        _
      // Predicated region
      $region21: #{coatt_layer.3} parent=11 // pred_check
        %p158 = pneg %p111
      $region22: #{coatt_layer.3} parent=11 // pred_check_branch
        %160 = sbr.rel (%p158) target = $region24
      $region23: #{coatt_layer.3} parent=11 // pred_region
        _
      $region24: #{coatt_layer.3} parent=11 // pred_fallthru
        _
    $region12: #{coatt_layer.3} parent=5 // pred_fallthru
      _
    %p161 = scmp.lt.s32.totalorder %s10, 4
    // Predicated region
    $region25: #{coatt_layer.3} parent=5 // pred_check
      %p162 = pneg %p161
    $region26: #{coatt_layer.3} parent=5 // pred_check_branch
      %164 = sbr.rel (%p162) target = $region28
    $region27: #{coatt_layer.3} parent=5 // pred_region
      // Predicated region
      $region29: #{coatt_layer.3} parent=27 // pred_check
        %p165 = pneg %p42
      $region30: #{coatt_layer.3} parent=27 // pred_check_branch
        %167 = sbr.rel (%p165) target = $region32
      $region31: #{coatt_layer.3} parent=27 // pred_region
        %p168 = scmp.lt.s32.totalorder %s17, 1
        %s169 = scalar_select %p168, %s17, 1
        %s170 = smul.addr %s169, 32
        %s171 = smul.addr %s170, 8
        %s172 = scalar_lea.vmem %s0, %s171
      $region32: #{coatt_layer.3} parent=27 // pred_fallthru
        _
    $region28: #{coatt_layer.3} parent=5 // pred_fallthru
      _
    %p173 = scmp.le.s32.totalorder 1, %s10
    %p174 = scmp.lt.s32.totalorder %s10, 5
    %p175 = pnand %p173, %p174
    %p176 = pneg %p175
    // Predicated region
    $region33: #{coatt_layer.3} parent=5 // pred_check
      _
    $region34: #{coatt_layer.3} parent=5 // pred_check_branch
      %178 = sbr.rel (%p175) target = $region36
    $region35: #{coatt_layer.3} parent=5 // pred_region
      %s179 = ssub.s32 %s10, 1
      %p180 = scmp.lt.s32.totalorder %s19, 1
      %s181 = scalar_select %p180, %s19, 1
      %s182 = smul.addr %s181, 32
      %s183 = smul.addr %s182, 8
      %s184 = scalar_lea.vmem %s0, %s183
      %p185 = pneg %p48
      %p186 = pneg %p45
      %p187 = pneg %p69
      %p188 = pneg %p66
      %p189 = pneg %p90
      %p190 = pneg %p87
      %p191 = pneg %p111
      %p192 = pneg %p108
      %p193 = pneg %p137
      %p194 = pneg %p134
      %p195 = scmp.lt.s32.totalorder %s19, 1
      %s196 = scalar_select %p195, %s19, 1
      %s197 = smul.addr %s196, 16
      %s198 = smul.addr %s197, 8
      %s199 = scalar_lea.vmem %s4, %s198
      %p200 = scmp.lt.s32.totalorder %s19, 1
      %s201 = scalar_select %p200, %s19, 1
      %s202 = smul.addr %s201, 32
      %s203 = smul.addr %s202, 8
      %s204 = scalar_lea.vmem %s0, %s203
      %p205 = scmp.lt.s32.totalorder %s19, 1
      %s206 = scalar_select %p205, %s19, 1
      %s207 = smul.addr %s206, 16
      %s208 = smul.addr %s207, 8
      %s209 = scalar_lea.vmem %s4, %s208
      %p210 = scmp.eq.s32.totalorder %s20, 0
      // Predicated region
      $region37: #{coatt_layer.3} parent=35 // pred_check
        %p211 = pneg %p210
      $region38: #{coatt_layer.3} parent=35 // pred_check_branch
        %213 = sbr.rel (%p211) target = $region40
      $region39: #{coatt_layer.3} parent=35 // pred_region
        %v214 = vld [vmem:[%s204] sm:$0xff]
        %v215 = vld [vmem:[%s204 + $0x8] sm:$0xff]
        %v216 = vld [vmem:[%s204 + $0x10] sm:$0xff]
        %v217 = vld [vmem:[%s204 + $0x18] sm:$0xff]
        %v218 = vld [vmem:[%s204 + $0x20] sm:$0xff]
        %v219 = vld [vmem:[%s204 + $0x28] sm:$0xff]
        %v220 = vld [vmem:[%s204 + $0x30] sm:$0xff]
        %v221 = vld [vmem:[%s204 + $0x38] sm:$0xff]
        %v222 = vld [vmem:[%s204 + $0x40] sm:$0xff]
        %v223 = vld [vmem:[%s204 + $0x48] sm:$0xff]
        %v224 = vld [vmem:[%s204 + $0x50] sm:$0xff]
        %v225 = vld [vmem:[%s204 + $0x58] sm:$0xff]
        %v226 = vld [vmem:[%s204 + $0x60] sm:$0xff]
        %v227 = vld [vmem:[%s204 + $0x68] sm:$0xff]
        %v228 = vld [vmem:[%s204 + $0x70] sm:$0xff]
        %v229 = vld [vmem:[%s204 + $0x78] sm:$0xff]
        %v230 = vld [vmem:[%s204 + $0x80] sm:$0xff]
        %v231 = vld [vmem:[%s204 + $0x88] sm:$0xff]
        %v232 = vld [vmem:[%s204 + $0x90] sm:$0xff]
        %v233 = vld [vmem:[%s204 + $0x98] sm:$0xff]
        %v234 = vld [vmem:[%s204 + $0xa0] sm:$0xff]
        %v235 = vld [vmem:[%s204 + $0xa8] sm:$0xff]
        %v236 = vld [vmem:[%s204 + $0xb0] sm:$0xff]
        %v237 = vld [vmem:[%s204 + $0xb8] sm:$0xff]
        %v238 = vld [vmem:[%s204 + $0xc0] sm:$0xff]
        %v239 = vld [vmem:[%s204 + $0xc8] sm:$0xff]
        %v240 = vld [vmem:[%s204 + $0xd0] sm:$0xff]
        %v241 = vld [vmem:[%s204 + $0xd8] sm:$0xff]
        %v242 = vld [vmem:[%s204 + $0xe0] sm:$0xff]
        %v243 = vld [vmem:[%s204 + $0xe8] sm:$0xff]
        %v244 = vld [vmem:[%s204 + $0xf0] sm:$0xff]
        %v245 = vld [vmem:[%s204 + $0xf8] sm:$0xff]
        %v246 = vld [vmem:[%s1] sm:$0xff]
        %v247 = vld [vmem:[%s1 + $0x8] sm:$0xff]
        %v248 = vld [vmem:[%s1 + $0x10] sm:$0xff]
        %v249 = vld [vmem:[%s1 + $0x18] sm:$0xff]
        %v250 = vld [vmem:[%s1 + $0x20] sm:$0xff]
        %v251 = vld [vmem:[%s1 + $0x28] sm:$0xff]
        %v252 = vld [vmem:[%s1 + $0x30] sm:$0xff]
        %v253 = vld [vmem:[%s1 + $0x38] sm:$0xff]
        %v254 = vld [vmem:[%s1 + $0x40] sm:$0xff]
        %v255 = vld [vmem:[%s1 + $0x48] sm:$0xff]
        %v256 = vld [vmem:[%s1 + $0x50] sm:$0xff]
        %v257 = vld [vmem:[%s1 + $0x58] sm:$0xff]
        %v258 = vld [vmem:[%s1 + $0x60] sm:$0xff]
        %v259 = vld [vmem:[%s1 + $0x68] sm:$0xff]
        %v260 = vld [vmem:[%s1 + $0x70] sm:$0xff]
        %v261 = vld [vmem:[%s1 + $0x78] sm:$0xff]
        %v262 = vld [vmem:[%s2] sm:$0xff]
        %v263 = vld [vmem:[%s2 + $0x8] sm:$0xff]
        %v264 = vld [vmem:[%s2 + $0x10] sm:$0xff]
        %v265 = vld [vmem:[%s2 + $0x18] sm:$0xff]
        %v266 = vld [vmem:[%s2 + $0x20] sm:$0xff]
        %v267 = vld [vmem:[%s2 + $0x28] sm:$0xff]
        %v268 = vld [vmem:[%s2 + $0x30] sm:$0xff]
        %v269 = vld [vmem:[%s2 + $0x38] sm:$0xff]
        %v270 = vld [vmem:[%s2 + $0x40] sm:$0xff]
        %v271 = vld [vmem:[%s2 + $0x48] sm:$0xff]
        %v272 = vld [vmem:[%s2 + $0x50] sm:$0xff]
        %v273 = vld [vmem:[%s2 + $0x58] sm:$0xff]
        %v274 = vld [vmem:[%s2 + $0x60] sm:$0xff]
        %v275 = vld [vmem:[%s2 + $0x68] sm:$0xff]
        %v276 = vld [vmem:[%s2 + $0x70] sm:$0xff]
        %v277 = vld [vmem:[%s2 + $0x78] sm:$0xff]
        %279 = vset.pattern.permute.xlu0 0
        %280 = vperm.xlu0 %279, %v262
        %v281 = vpop.permute.xlu0 %280
        %284 = vset.pattern.permute.xlu0 0
        %285 = vperm.xlu0 %284, %v263
        %v286 = vpop.permute.xlu0 %285
        %289 = vset.pattern.permute.xlu0 0
        %290 = vperm.xlu0 %289, %v264
        %v291 = vpop.permute.xlu0 %290
        %294 = vset.pattern.permute.xlu0 0
        %295 = vperm.xlu0 %294, %v265
        %v296 = vpop.permute.xlu0 %295
        %299 = vset.pattern.permute.xlu0 0
        %300 = vperm.xlu0 %299, %v266
        %v301 = vpop.permute.xlu0 %300
        %304 = vset.pattern.permute.xlu0 0
        %305 = vperm.xlu0 %304, %v267
        %v306 = vpop.permute.xlu0 %305
        %309 = vset.pattern.permute.xlu0 0
        %310 = vperm.xlu0 %309, %v268
        %v311 = vpop.permute.xlu0 %310
        %314 = vset.pattern.permute.xlu0 0
        %315 = vperm.xlu0 %314, %v269
        %v316 = vpop.permute.xlu0 %315
        %319 = vset.pattern.permute.xlu0 0
        %320 = vperm.xlu0 %319, %v270
        %v321 = vpop.permute.xlu0 %320
        %324 = vset.pattern.permute.xlu0 0
        %325 = vperm.xlu0 %324, %v271
        %v326 = vpop.permute.xlu0 %325
        %329 = vset.pattern.permute.xlu0 0
        %330 = vperm.xlu0 %329, %v272
        %v331 = vpop.permute.xlu0 %330
        %334 = vset.pattern.permute.xlu0 0
        %335 = vperm.xlu0 %334, %v273
        %v336 = vpop.permute.xlu0 %335
        %339 = vset.pattern.permute.xlu0 0
        %340 = vperm.xlu0 %339, %v274
        %v341 = vpop.permute.xlu0 %340
        %344 = vset.pattern.permute.xlu0 0
        %345 = vperm.xlu0 %344, %v275
        %v346 = vpop.permute.xlu0 %345
        %349 = vset.pattern.permute.xlu0 0
        %350 = vperm.xlu0 %349, %v276
        %v351 = vpop.permute.xlu0 %350
        %354 = vset.pattern.permute.xlu0 0
        %355 = vperm.xlu0 %354, %v277
        %v356 = vpop.permute.xlu0 %355
        %358 = vmatprep.subr.mxu0 %v215
        %359 = vmatpush1.msra.mxu0 %v214
        %360 = vmatprep.subr.mxu0 %v217
        %361 = vmatpush1.msra.mxu0 %v216
        %362 = vmatprep.subr.mxu0 %v219
        %363 = vmatpush1.msra.mxu0 %v218
        %364 = vmatprep.subr.mxu0 %v221
        %365 = vmatpush1.msra.mxu0 %v220
        %366 = vmatprep.subr.mxu0 %v223
        %367 = vmatpush1.msra.mxu0 %v222
        %368 = vmatprep.subr.mxu0 %v225
        %369 = vmatpush1.msra.mxu0 %v224
        %370 = vmatprep.subr.mxu0 %v227
        %371 = vmatpush1.msra.mxu0 %v226
        %372 = vmatprep.subr.mxu0 %v229
        %373 = vmatpush1.msra.mxu0 %v228
        %374 = vmatprep.subr.mxu0 %v231
        %375 = vmatpush1.msra.mxu0 %v230
        %376 = vmatprep.subr.mxu0 %v233
        %377 = vmatpush1.msra.mxu0 %v232
        %378 = vmatprep.subr.mxu0 %v235
        %379 = vmatpush1.msra.mxu0 %v234
        %380 = vmatprep.subr.mxu0 %v237
        %381 = vmatpush1.msra.mxu0 %v236
        %382 = vmatprep.subr.mxu0 %v239
        %383 = vmatpush1.msra.mxu0 %v238
        %384 = vmatprep.subr.mxu0 %v241
        %385 = vmatpush1.msra.mxu0 %v240
        %386 = vmatprep.subr.mxu0 %v243
        %387 = vmatpush1.msra.mxu0 %v242
        %388 = vmatprep.subr.mxu0 %v245
        %389 = vmatpush1.msra.mxu0 %v244
        %390 = vmatprep.subr.mxu0 0.0
        %391 = vmatpush1.msra.mxu0 0.0
        %392 = vmatprep.subr.mxu0 0.0
        %393 = vmatpush1.msra.mxu0 0.0
        %394 = vmatprep.subr.mxu0 0.0
        %395 = vmatpush1.msra.mxu0 0.0
        %396 = vmatprep.subr.mxu0 0.0
        %397 = vmatpush1.msra.mxu0 0.0
        %398 = vmatprep.subr.mxu0 0.0
        %399 = vmatpush1.msra.mxu0 0.0
        %400 = vmatprep.subr.mxu0 0.0
        %401 = vmatpush1.msra.mxu0 0.0
        %402 = vmatprep.subr.mxu0 0.0
        %403 = vmatpush1.msra.mxu0 0.0
        %404 = vmatprep.subr.mxu0 0.0
        %405 = vmatpush1.msra.mxu0 0.0
        %406 = vmatprep.subr.mxu0 0.0
        %407 = vmatpush1.msra.mxu0 0.0
        %408 = vmatprep.subr.mxu0 0.0
        %409 = vmatpush1.msra.mxu0 0.0
        %410 = vmatprep.subr.mxu0 0.0
        %411 = vmatpush1.msra.mxu0 0.0
        %412 = vmatprep.subr.mxu0 0.0
        %413 = vmatpush1.msra.mxu0 0.0
        %414 = vmatprep.subr.mxu0 0.0
        %415 = vmatpush1.msra.mxu0 0.0
        %416 = vmatprep.subr.mxu0 0.0
        %417 = vmatpush1.msra.mxu0 0.0
        %418 = vmatprep.subr.mxu0 0.0
        %419 = vmatpush1.msra.mxu0 0.0
        %420 = vmatprep.subr.mxu0 0.0
        %421 = vmatpush1.msra.mxu0 0.0
        %422 = vmatprep.mubr.f32.mxu0 0.0
        %423 = vmatmul.mubr.f32.gmra.mrb[0].mxu0 %v246
        %v424 = vpop.f32.mrb[0].mxu0
        %v425 = vadd.f32 %v281, %v424
        %v426 = vpop.f32.mrb[0].mxu0
        %v427 = vadd.f32 %v281, %v426
        %428 = vmatprep.mubr.f32.mxu0 0.0
        %429 = vmatmul.mubr.f32.gmra.mrb[0].mxu0 %v247
        %v430 = vpop.f32.mrb[0].mxu0
        %v431 = vadd.f32 %v286, %v430
        %v432 = vpop.f32.mrb[0].mxu0
        %v433 = vadd.f32 %v286, %v432
        %434 = vmatprep.mubr.f32.mxu0 0.0
        %435 = vmatmul.mubr.f32.gmra.mrb[0].mxu0 %v248
        %v436 = vpop.f32.mrb[0].mxu0
        %v437 = vadd.f32 %v291, %v436
        %v438 = vpop.f32.mrb[0].mxu0
        %v439 = vadd.f32 %v291, %v438
        %440 = vmatprep.mubr.f32.mxu0 0.0
        %441 = vmatmul.mubr.f32.gmra.mrb[0].mxu0 %v249
        %v442 = vpop.f32.mrb[0].mxu0
        %v443 = vadd.f32 %v296, %v442
        %v444 = vpop.f32.mrb[0].mxu0
        %v445 = vadd.f32 %v296, %v444
        %446 = vmatprep.mubr.f32.mxu0 0.0
        %447 = vmatmul.mubr.f32.gmra.mrb[0].mxu0 %v250
        %v448 = vpop.f32.mrb[0].mxu0
        %v449 = vadd.f32 %v301, %v448
        %v450 = vpop.f32.mrb[0].mxu0
        %v451 = vadd.f32 %v301, %v450
        %452 = vmatprep.mubr.f32.mxu0 0.0
        %453 = vmatmul.mubr.f32.gmra.mrb[0].mxu0 %v251
        %v454 = vpop.f32.mrb[0].mxu0
        %v455 = vadd.f32 %v306, %v454
        %v456 = vpop.f32.mrb[0].mxu0
        %v457 = vadd.f32 %v306, %v456
        %458 = vmatprep.mubr.f32.mxu0 0.0
        %459 = vmatmul.mubr.f32.gmra.mrb[0].mxu0 %v252
        %v460 = vpop.f32.mrb[0].mxu0
        %v461 = vadd.f32 %v311, %v460
        %v462 = vpop.f32.mrb[0].mxu0
        %v463 = vadd.f32 %v311, %v462
        %464 = vmatprep.mubr.f32.mxu0 0.0
        %465 = vmatmul.mubr.f32.gmra.mrb[0].mxu0 %v253
        %v466 = vpop.f32.mrb[0].mxu0
        %v467 = vadd.f32 %v316, %v466
        %v468 = vpop.f32.mrb[0].mxu0
        %v469 = vadd.f32 %v316, %v468
        %470 = vmatprep.mubr.f32.mxu0 0.0
        %471 = vmatmul.mubr.f32.gmra.mrb[0].mxu0 %v254
        %v472 = vpop.f32.mrb[0].mxu0
        %v473 = vadd.f32 %v321, %v472
        %v474 = vpop.f32.mrb[0].mxu0
        %v475 = vadd.f32 %v321, %v474
        %476 = vmatprep.mubr.f32.mxu0 0.0
        %477 = vmatmul.mubr.f32.gmra.mrb[0].mxu0 %v255
        %v478 = vpop.f32.mrb[0].mxu0
        %v479 = vadd.f32 %v326, %v478
        %v480 = vpop.f32.mrb[0].mxu0
        %v481 = vadd.f32 %v326, %v480
        %482 = vmatprep.mubr.f32.mxu0 0.0
        %483 = vmatmul.mubr.f32.gmra.mrb[0].mxu0 %v256
        %v484 = vpop.f32.mrb[0].mxu0
        %v485 = vadd.f32 %v331, %v484
        %v486 = vpop.f32.mrb[0].mxu0
        %v487 = vadd.f32 %v331, %v486
        %488 = vmatprep.mubr.f32.mxu0 0.0
        %489 = vmatmul.mubr.f32.gmra.mrb[0].mxu0 %v257
        %v490 = vpop.f32.mrb[0].mxu0
        %v491 = vadd.f32 %v336, %v490
        %v492 = vpop.f32.mrb[0].mxu0
        %v493 = vadd.f32 %v336, %v492
        %494 = vmatprep.mubr.f32.mxu0 0.0
        %495 = vmatmul.mubr.f32.gmra.mrb[0].mxu0 %v258
        %v496 = vpop.f32.mrb[0].mxu0
        %v497 = vadd.f32 %v341, %v496
        %v498 = vpop.f32.mrb[0].mxu0
        %v499 = vadd.f32 %v341, %v498
        %500 = vmatprep.mubr.f32.mxu0 0.0
        %501 = vmatmul.mubr.f32.gmra.mrb[0].mxu0 %v259
        %v502 = vpop.f32.mrb[0].mxu0
        %v503 = vadd.f32 %v346, %v502
        %v504 = vpop.f32.mrb[0].mxu0
        %v505 = vadd.f32 %v346, %v504
        %506 = vmatprep.mubr.f32.mxu0 0.0
        %507 = vmatmul.mubr.f32.gmra.mrb[0].mxu0 %v260
        %v508 = vpop.f32.mrb[0].mxu0
        %v509 = vadd.f32 %v351, %v508
        %v510 = vpop.f32.mrb[0].mxu0
        %v511 = vadd.f32 %v351, %v510
        %512 = vmatprep.mubr.f32.mxu0 0.0
        %513 = vmatmul.mubr.f32.gmra.mrb[0].mxu0 %v261
        %v514 = vpop.f32.mrb[0].mxu0
        %v515 = vadd.f32 %v356, %v514
        %v516 = vpop.f32.mrb[0].mxu0
        %v517 = vadd.f32 %v356, %v516
        %518 = vdwg.mxu0
        %519 = vst [vmem:[#allocation2] sm:$0xff] %v425
        %520 = vst [vmem:[#allocation2 + $0x8] sm:$0xff] %v427
        %521 = vst [vmem:[#allocation2 + $0x10] sm:$0xff] %v431
        %522 = vst [vmem:[#allocation2 + $0x18] sm:$0xff] %v433
        %523 = vst [vmem:[#allocation2 + $0x20] sm:$0xff] %v437
        %524 = vst [vmem:[#allocation2 + $0x28] sm:$0xff] %v439
        %525 = vst [vmem:[#allocation2 + $0x30] sm:$0xff] %v443
        %526 = vst [vmem:[#allocation2 + $0x38] sm:$0xff] %v445
        %527 = vst [vmem:[#allocation2 + $0x40] sm:$0xff] %v449
        %528 = vst [vmem:[#allocation2 + $0x48] sm:$0xff] %v451
        %529 = vst [vmem:[#allocation2 + $0x50] sm:$0xff] %v455
        %530 = vst [vmem:[#allocation2 + $0x58] sm:$0xff] %v457
        %531 = vst [vmem:[#allocation2 + $0x60] sm:$0xff] %v461
        %532 = vst [vmem:[#allocation2 + $0x68] sm:$0xff] %v463
        %533 = vst [vmem:[#allocation2 + $0x70] sm:$0xff] %v467
        %534 = vst [vmem:[#allocation2 + $0x78] sm:$0xff] %v469
        %535 = vst [vmem:[#allocation2 + $0x80] sm:$0xff] %v473
        %536 = vst [vmem:[#allocation2 + $0x88] sm:$0xff] %v475
        %537 = vst [vmem:[#allocation2 + $0x90] sm:$0xff] %v479
        %538 = vst [vmem:[#allocation2 + $0x98] sm:$0xff] %v481
        %539 = vst [vmem:[#allocation2 + $0xa0] sm:$0xff] %v485
        %540 = vst [vmem:[#allocation2 + $0xa8] sm:$0xff] %v487
        %541 = vst [vmem:[#allocation2 + $0xb0] sm:$0xff] %v491
        %542 = vst [vmem:[#allocation2 + $0xb8] sm:$0xff] %v493
        %543 = vst [vmem:[#allocation2 + $0xc0] sm:$0xff] %v497
        %544 = vst [vmem:[#allocation2 + $0xc8] sm:$0xff] %v499
        %545 = vst [vmem:[#allocation2 + $0xd0] sm:$0xff] %v503
        %546 = vst [vmem:[#allocation2 + $0xd8] sm:$0xff] %v505
        %547 = vst [vmem:[#allocation2 + $0xe0] sm:$0xff] %v509
        %548 = vst [vmem:[#allocation2 + $0xe8] sm:$0xff] %v511
        %549 = vst [vmem:[#allocation2 + $0xf0] sm:$0xff] %v515
        %550 = vst [vmem:[#allocation2 + $0xf8] sm:$0xff] %v517
        %v551 = vlaneseq
        %vm552 = vcmp.ge.s32.totalorder %v551, 0
        %vm553 = vcmp.lt.s32.totalorder %v551, 256
        %vm554 = vmand %vm552, %vm553
        %555 = vst.msk [vmem:[#allocation3] sm:$0x3] %vm554, 0.0
      $region40: #{coatt_layer.3} parent=35 // pred_fallthru
        _
      %s556 = smul.u32 %s20, 256
      %s557 = scalar_lea.vmem %s3, %s556
      %v558 = vld [vmem:[%s557] sm:$0xff]
      %v559 = vld [vmem:[%s557 + $0x8] sm:$0xff]
      %v560 = vld [vmem:[%s557 + $0x10] sm:$0xff]
      %v561 = vld [vmem:[%s557 + $0x18] sm:$0xff]
      %v562 = vld [vmem:[%s557 + $0x20] sm:$0xff]
      %v563 = vld [vmem:[%s557 + $0x28] sm:$0xff]
      %v564 = vld [vmem:[%s557 + $0x30] sm:$0xff]
      %v565 = vld [vmem:[%s557 + $0x38] sm:$0xff]
      %v566 = vld [vmem:[%s557 + $0x40] sm:$0xff]
      %v567 = vld [vmem:[%s557 + $0x48] sm:$0xff]
      %v568 = vld [vmem:[%s557 + $0x50] sm:$0xff]
      %v569 = vld [vmem:[%s557 + $0x58] sm:$0xff]
      %v570 = vld [vmem:[%s557 + $0x60] sm:$0xff]
      %v571 = vld [vmem:[%s557 + $0x68] sm:$0xff]
      %v572 = vld [vmem:[%s557 + $0x70] sm:$0xff]
      %v573 = vld [vmem:[%s557 + $0x78] sm:$0xff]
      %v574 = vld [vmem:[%s557 + $0x80] sm:$0xff]
      %v575 = vld [vmem:[%s557 + $0x88] sm:$0xff]
      %v576 = vld [vmem:[%s557 + $0x90] sm:$0xff]
      %v577 = vld [vmem:[%s557 + $0x98] sm:$0xff]
      %v578 = vld [vmem:[%s557 + $0xa0] sm:$0xff]
      %v579 = vld [vmem:[%s557 + $0xa8] sm:$0xff]
      %v580 = vld [vmem:[%s557 + $0xb0] sm:$0xff]
      %v581 = vld [vmem:[%s557 + $0xb8] sm:$0xff]
      %v582 = vld [vmem:[%s557 + $0xc0] sm:$0xff]
      %v583 = vld [vmem:[%s557 + $0xc8] sm:$0xff]
      %v584 = vld [vmem:[%s557 + $0xd0] sm:$0xff]
      %v585 = vld [vmem:[%s557 + $0xd8] sm:$0xff]
      %v586 = vld [vmem:[%s557 + $0xe0] sm:$0xff]
      %v587 = vld [vmem:[%s557 + $0xe8] sm:$0xff]
      %v588 = vld [vmem:[%s557 + $0xf0] sm:$0xff]
      %v589 = vld [vmem:[%s557 + $0xf8] sm:$0xff]
      %v590 = vld [vmem:[#allocation2] sm:$0xff]
      %v591 = vld [vmem:[#allocation2 + $0x8] sm:$0xff]
      %v592 = vld [vmem:[#allocation2 + $0x10] sm:$0xff]
      %v593 = vld [vmem:[#allocation2 + $0x18] sm:$0xff]
      %v594 = vld [vmem:[#allocation2 + $0x20] sm:$0xff]
      %v595 = vld [vmem:[#allocation2 + $0x28] sm:$0xff]
      %v596 = vld [vmem:[#allocation2 + $0x30] sm:$0xff]
      %v597 = vld [vmem:[#allocation2 + $0x38] sm:$0xff]
      %v598 = vld [vmem:[#allocation2 + $0x40] sm:$0xff]
      %v599 = vld [vmem:[#allocation2 + $0x48] sm:$0xff]
      %v600 = vld [vmem:[#allocation2 + $0x50] sm:$0xff]
      %v601 = vld [vmem:[#allocation2 + $0x58] sm:$0xff]
      %v602 = vld [vmem:[#allocation2 + $0x60] sm:$0xff]
      %v603 = vld [vmem:[#allocation2 + $0x68] sm:$0xff]
      %v604 = vld [vmem:[#allocation2 + $0x70] sm:$0xff]
      %v605 = vld [vmem:[#allocation2 + $0x78] sm:$0xff]
      %v606 = vld [vmem:[#allocation2 + $0x80] sm:$0xff]
      %v607 = vld [vmem:[#allocation2 + $0x88] sm:$0xff]
      %v608 = vld [vmem:[#allocation2 + $0x90] sm:$0xff]
      %v609 = vld [vmem:[#allocation2 + $0x98] sm:$0xff]
      %v610 = vld [vmem:[#allocation2 + $0xa0] sm:$0xff]
      %v611 = vld [vmem:[#allocation2 + $0xa8] sm:$0xff]
      %v612 = vld [vmem:[#allocation2 + $0xb0] sm:$0xff]
      %v613 = vld [vmem:[#allocation2 + $0xb8] sm:$0xff]
      %v614 = vld [vmem:[#allocation2 + $0xc0] sm:$0xff]
      %v615 = vld [vmem:[#allocation2 + $0xc8] sm:$0xff]
      %v616 = vld [vmem:[#allocation2 + $0xd0] sm:$0xff]
      %v617 = vld [vmem:[#allocation2 + $0xd8] sm:$0xff]
      %v618 = vld [vmem:[#allocation2 + $0xe0] sm:$0xff]
      %v619 = vld [vmem:[#allocation2 + $0xe8] sm:$0xff]
      %v620 = vld [vmem:[#allocation2 + $0xf0] sm:$0xff]
      %v621 = vld [vmem:[#allocation2 + $0xf8] sm:$0xff]
      %622 = vmatprep.subr.mxu0 %v591
      %623 = vmatpush1.msra.mxu0 %v590
      %624 = vmatprep.subr.mxu0 %v593
      %625 = vmatpush1.msra.mxu0 %v592
      %626 = vmatprep.subr.mxu0 %v595
      %627 = vmatpush1.msra.mxu0 %v594
      %628 = vmatprep.subr.mxu0 %v597
      %629 = vmatpush1.msra.mxu0 %v596
      %630 = vmatprep.subr.mxu0 %v599
      %631 = vmatpush1.msra.mxu0 %v598
      %632 = vmatprep.subr.mxu0 %v601
      %633 = vmatpush1.msra.mxu0 %v600
      %634 = vmatprep.subr.mxu0 %v603
      %635 = vmatpush1.msra.mxu0 %v602
      %636 = vmatprep.subr.mxu0 %v605
      %637 = vmatpush1.msra.mxu0 %v604
      %638 = vmatprep.subr.mxu0 %v607
      %639 = vmatpush1.msra.mxu0 %v606
      %640 = vmatprep.subr.mxu0 %v609
      %641 = vmatpush1.msra.mxu0 %v608
      %642 = vmatprep.subr.mxu0 %v611
      %643 = vmatpush1.msra.mxu0 %v610
      %644 = vmatprep.subr.mxu0 %v613
      %645 = vmatpush1.msra.mxu0 %v612
      %646 = vmatprep.subr.mxu0 %v615
      %647 = vmatpush1.msra.mxu0 %v614
      %648 = vmatprep.subr.mxu0 %v617
      %649 = vmatpush1.msra.mxu0 %v616
      %650 = vmatprep.subr.mxu0 %v619
      %651 = vmatpush1.msra.mxu0 %v618
      %652 = vmatprep.subr.mxu0 %v621
      %653 = vmatpush1.msra.mxu0 %v620
      %654 = vmatprep.subr.mxu0 0.0
      %655 = vmatpush1.msra.mxu0 0.0
      %656 = vmatprep.subr.mxu0 0.0
      %657 = vmatpush1.msra.mxu0 0.0
      %658 = vmatprep.subr.mxu0 0.0
      %659 = vmatpush1.msra.mxu0 0.0
      %660 = vmatprep.subr.mxu0 0.0
      %661 = vmatpush1.msra.mxu0 0.0
      %662 = vmatprep.subr.mxu0 0.0
      %663 = vmatpush1.msra.mxu0 0.0
      %664 = vmatprep.subr.mxu0 0.0
      %665 = vmatpush1.msra.mxu0 0.0
      %666 = vmatprep.subr.mxu0 0.0
      %667 = vmatpush1.msra.mxu0 0.0
      %668 = vmatprep.subr.mxu0 0.0
      %669 = vmatpush1.msra.mxu0 0.0
      %670 = vmatprep.subr.mxu0 0.0
      %671 = vmatpush1.msra.mxu0 0.0
      %672 = vmatprep.subr.mxu0 0.0
      %673 = vmatpush1.msra.mxu0 0.0
      %674 = vmatprep.subr.mxu0 0.0
      %675 = vmatpush1.msra.mxu0 0.0
      %676 = vmatprep.subr.mxu0 0.0
      %677 = vmatpush1.msra.mxu0 0.0
      %678 = vmatprep.subr.mxu0 0.0
      %679 = vmatpush1.msra.mxu0 0.0
      %680 = vmatprep.subr.mxu0 0.0
      %681 = vmatpush1.msra.mxu0 0.0
      %682 = vmatprep.subr.mxu0 0.0
      %683 = vmatpush1.msra.mxu0 0.0
      %684 = vmatprep.subr.mxu0 0.0
      %685 = vmatpush1.msra.mxu0 0.0
      %686 = vmatprep.mubr.f32.mxu0 0.0
      %687 = vmatmul.mubr.f32.gmra.mrb[0].mxu0 %v558
      %v688 = vpop.f32.mrb[0].mxu0
      %v689 = vadd.f32 0.0, %v688
      %v690 = vpop.f32.mrb[0].mxu0
      %v691 = vadd.f32 0.0, %v690
      %692 = vmatprep.mubr.f32.mxu0 0.0
      %693 = vmatmul.mubr.f32.gmra.mrb[0].mxu0 %v559
      %v694 = vpop.f32.mrb[0].mxu0
      %v695 = vadd.f32 0.0, %v694
      %v696 = vpop.f32.mrb[0].mxu0
      %v697 = vadd.f32 0.0, %v696
      %698 = vmatprep.mubr.f32.mxu0 0.0
      %699 = vmatmul.mubr.f32.gmra.mrb[0].mxu0 %v560
      %v700 = vpop.f32.mrb[0].mxu0
      %v701 = vadd.f32 0.0, %v700
      %v702 = vpop.f32.mrb[0].mxu0
      %v703 = vadd.f32 0.0, %v702
      %704 = vmatprep.mubr.f32.mxu0 0.0
      %705 = vmatmul.mubr.f32.gmra.mrb[0].mxu0 %v561
      %v706 = vpop.f32.mrb[0].mxu0
      %v707 = vadd.f32 0.0, %v706
      %v708 = vpop.f32.mrb[0].mxu0
      %v709 = vadd.f32 0.0, %v708
      %710 = vmatprep.mubr.f32.mxu0 0.0
      %711 = vmatmul.mubr.f32.gmra.mrb[0].mxu0 %v562
      %v712 = vpop.f32.mrb[0].mxu0
      %v713 = vadd.f32 0.0, %v712
      %v714 = vpop.f32.mrb[0].mxu0
      %v715 = vadd.f32 0.0, %v714
      %716 = vmatprep.mubr.f32.mxu0 0.0
      %717 = vmatmul.mubr.f32.gmra.mrb[0].mxu0 %v563
      %v718 = vpop.f32.mrb[0].mxu0
      %v719 = vadd.f32 0.0, %v718
      %v720 = vpop.f32.mrb[0].mxu0
      %v721 = vadd.f32 0.0, %v720
      %722 = vmatprep.mubr.f32.mxu0 0.0
      %723 = vmatmul.mubr.f32.gmra.mrb[0].mxu0 %v564
      %v724 = vpop.f32.mrb[0].mxu0
      %v725 = vadd.f32 0.0, %v724
      %v726 = vpop.f32.mrb[0].mxu0
      %v727 = vadd.f32 0.0, %v726
      %728 = vmatprep.mubr.f32.mxu0 0.0
      %729 = vmatmul.mubr.f32.gmra.mrb[0].mxu0 %v565
      %v730 = vpop.f32.mrb[0].mxu0
      %v731 = vadd.f32 0.0, %v730
      %v732 = vpop.f32.mrb[0].mxu0
      %v733 = vadd.f32 0.0, %v732
      %734 = vmatprep.mubr.f32.mxu0 0.0
      %735 = vmatmul.mubr.f32.gmra.mrb[0].mxu0 %v566
      %v736 = vpop.f32.mrb[0].mxu0
      %v737 = vadd.f32 0.0, %v736
      %v738 = vpop.f32.mrb[0].mxu0
      %v739 = vadd.f32 0.0, %v738
      %740 = vmatprep.mubr.f32.mxu0 0.0
      %741 = vmatmul.mubr.f32.gmra.mrb[0].mxu0 %v567
      %v742 = vpop.f32.mrb[0].mxu0
      %v743 = vadd.f32 0.0, %v742
      %v744 = vpop.f32.mrb[0].mxu0
      %v745 = vadd.f32 0.0, %v744
      %746 = vmatprep.mubr.f32.mxu0 0.0
      %747 = vmatmul.mubr.f32.gmra.mrb[0].mxu0 %v568
      %v748 = vpop.f32.mrb[0].mxu0
      %v749 = vadd.f32 0.0, %v748
      %v750 = vpop.f32.mrb[0].mxu0
      %v751 = vadd.f32 0.0, %v750
      %752 = vmatprep.mubr.f32.mxu0 0.0
      %753 = vmatmul.mubr.f32.gmra.mrb[0].mxu0 %v569
      %v754 = vpop.f32.mrb[0].mxu0
      %v755 = vadd.f32 0.0, %v754
      %v756 = vpop.f32.mrb[0].mxu0
      %v757 = vadd.f32 0.0, %v756
      %758 = vmatprep.mubr.f32.mxu0 0.0
      %759 = vmatmul.mubr.f32.gmra.mrb[0].mxu0 %v570
      %v760 = vpop.f32.mrb[0].mxu0
      %v761 = vadd.f32 0.0, %v760
      %v762 = vpop.f32.mrb[0].mxu0
      %v763 = vadd.f32 0.0, %v762
      %764 = vmatprep.mubr.f32.mxu0 0.0
      %765 = vmatmul.mubr.f32.gmra.mrb[0].mxu0 %v571
      %v766 = vpop.f32.mrb[0].mxu0
      %v767 = vadd.f32 0.0, %v766
      %v768 = vpop.f32.mrb[0].mxu0
      %v769 = vadd.f32 0.0, %v768
      %770 = vmatprep.mubr.f32.mxu0 0.0
      %771 = vmatmul.mubr.f32.gmra.mrb[0].mxu0 %v572
      %v772 = vpop.f32.mrb[0].mxu0
      %v773 = vadd.f32 0.0, %v772
      %v774 = vpop.f32.mrb[0].mxu0
      %v775 = vadd.f32 0.0, %v774
      %776 = vmatprep.mubr.f32.mxu0 0.0
      %777 = vmatmul.mubr.f32.gmra.mrb[0].mxu0 %v573
      %v778 = vpop.f32.mrb[0].mxu0
      %v779 = vadd.f32 0.0, %v778
      %v780 = vpop.f32.mrb[0].mxu0
      %v781 = vadd.f32 0.0, %v780
      %782 = vmatprep.mubr.f32.mxu0 0.0
      %783 = vmatmul.mubr.f32.gmra.mrb[0].mxu0 %v574
      %v784 = vpop.f32.mrb[0].mxu0
      %v785 = vadd.f32 0.0, %v784
      %v786 = vpop.f32.mrb[0].mxu0
      %v787 = vadd.f32 0.0, %v786
      %788 = vmatprep.mubr.f32.mxu0 0.0
      %789 = vmatmul.mubr.f32.gmra.mrb[0].mxu0 %v575
      %v790 = vpop.f32.mrb[0].mxu0
      %v791 = vadd.f32 0.0, %v790
      %v792 = vpop.f32.mrb[0].mxu0
      %v793 = vadd.f32 0.0, %v792
      %794 = vmatprep.mubr.f32.mxu0 0.0
      %795 = vmatmul.mubr.f32.gmra.mrb[0].mxu0 %v576
      %v796 = vpop.f32.mrb[0].mxu0
      %v797 = vadd.f32 0.0, %v796
      %v798 = vpop.f32.mrb[0].mxu0
      %v799 = vadd.f32 0.0, %v798
      %800 = vmatprep.mubr.f32.mxu0 0.0
      %801 = vmatmul.mubr.f32.gmra.mrb[0].mxu0 %v577
      %v802 = vpop.f32.mrb[0].mxu0
      %v803 = vadd.f32 0.0, %v802
      %v804 = vpop.f32.mrb[0].mxu0
      %v805 = vadd.f32 0.0, %v804
      %806 = vmatprep.mubr.f32.mxu0 0.0
      %807 = vmatmul.mubr.f32.gmra.mrb[0].mxu0 %v578
      %v808 = vpop.f32.mrb[0].mxu0
      %v809 = vadd.f32 0.0, %v808
      %v810 = vpop.f32.mrb[0].mxu0
      %v811 = vadd.f32 0.0, %v810
      %812 = vmatprep.mubr.f32.mxu0 0.0
      %813 = vmatmul.mubr.f32.gmra.mrb[0].mxu0 %v579
      %v814 = vpop.f32.mrb[0].mxu0
      %v815 = vadd.f32 0.0, %v814
      %v816 = vpop.f32.mrb[0].mxu0
      %v817 = vadd.f32 0.0, %v816
      %818 = vmatprep.mubr.f32.mxu0 0.0
      %819 = vmatmul.mubr.f32.gmra.mrb[0].mxu0 %v580
      %v820 = vpop.f32.mrb[0].mxu0
      %v821 = vadd.f32 0.0, %v820
      %v822 = vpop.f32.mrb[0].mxu0
      %v823 = vadd.f32 0.0, %v822
      %824 = vmatprep.mubr.f32.mxu0 0.0
      %825 = vmatmul.mubr.f32.gmra.mrb[0].mxu0 %v581
      %v826 = vpop.f32.mrb[0].mxu0
      %v827 = vadd.f32 0.0, %v826
      %v828 = vpop.f32.mrb[0].mxu0
      %v829 = vadd.f32 0.0, %v828
      %830 = vmatprep.mubr.f32.mxu0 0.0
      %831 = vmatmul.mubr.f32.gmra.mrb[0].mxu0 %v582
      %v832 = vpop.f32.mrb[0].mxu0
      %v833 = vadd.f32 0.0, %v832
      %v834 = vpop.f32.mrb[0].mxu0
      %v835 = vadd.f32 0.0, %v834
      %836 = vmatprep.mubr.f32.mxu0 0.0
      %837 = vmatmul.mubr.f32.gmra.mrb[0].mxu0 %v583
      %v838 = vpop.f32.mrb[0].mxu0
      %v839 = vadd.f32 0.0, %v838
      %v840 = vpop.f32.mrb[0].mxu0
      %v841 = vadd.f32 0.0, %v840
      %842 = vmatprep.mubr.f32.mxu0 0.0
      %843 = vmatmul.mubr.f32.gmra.mrb[0].mxu0 %v584
      %v844 = vpop.f32.mrb[0].mxu0
      %v845 = vadd.f32 0.0, %v844
      %v846 = vpop.f32.mrb[0].mxu0
      %v847 = vadd.f32 0.0, %v846
      %848 = vmatprep.mubr.f32.mxu0 0.0
      %849 = vmatmul.mubr.f32.gmra.mrb[0].mxu0 %v585
      %v850 = vpop.f32.mrb[0].mxu0
      %v851 = vadd.f32 0.0, %v850
      %v852 = vpop.f32.mrb[0].mxu0
      %v853 = vadd.f32 0.0, %v852
      %854 = vmatprep.mubr.f32.mxu0 0.0
      %855 = vmatmul.mubr.f32.gmra.mrb[0].mxu0 %v586
      %v856 = vpop.f32.mrb[0].mxu0
      %v857 = vadd.f32 0.0, %v856
      %v858 = vpop.f32.mrb[0].mxu0
      %v859 = vadd.f32 0.0, %v858
      %860 = vmatprep.mubr.f32.mxu0 0.0
      %861 = vmatmul.mubr.f32.gmra.mrb[0].mxu0 %v587
      %v862 = vpop.f32.mrb[0].mxu0
      %v863 = vadd.f32 0.0, %v862
      %v864 = vpop.f32.mrb[0].mxu0
      %v865 = vadd.f32 0.0, %v864
      %866 = vmatprep.mubr.f32.mxu0 0.0
      %867 = vmatmul.mubr.f32.gmra.mrb[0].mxu0 %v588
      %v868 = vpop.f32.mrb[0].mxu0
      %v869 = vadd.f32 0.0, %v868
      %v870 = vpop.f32.mrb[0].mxu0
      %v871 = vadd.f32 0.0, %v870
      %872 = vmatprep.mubr.f32.mxu0 0.0
      %873 = vmatmul.mubr.f32.gmra.mrb[0].mxu0 %v589
      %v874 = vpop.f32.mrb[0].mxu0
      %v875 = vadd.f32 0.0, %v874
      %v876 = vpop.f32.mrb[0].mxu0
      %v877 = vadd.f32 0.0, %v876
      %878 = vdwg.mxu0
      %v879 = vld [vmem:[#allocation3] sm:$0x3]
      %v880 = vmax.f32 %v689, %v701
      %v881 = vmax.f32 %v695, %v707
      %v882 = vmax.f32 %v880, %v713
      %v883 = vmax.f32 %v881, %v719
      %v884 = vmax.f32 %v882, %v725
      %v885 = vmax.f32 %v883, %v731
      %v886 = vmax.f32 %v884, %v737
      %v887 = vmax.f32 %v885, %v743
      %v888 = vmax.f32 %v886, %v749
      %v889 = vmax.f32 %v887, %v755
      %v890 = vmax.f32 %v888, %v761
      %v891 = vmax.f32 %v889, %v767
      %v892 = vmax.f32 %v890, %v773
      %v893 = vmax.f32 %v891, %v779
      %v894 = vmax.f32 %v892, %v785
      %v895 = vmax.f32 %v893, %v791
      %v896 = vmax.f32 %v894, %v797
      %v897 = vmax.f32 %v895, %v803
      %v898 = vmax.f32 %v896, %v809
      %v899 = vmax.f32 %v897, %v815
      %v900 = vmax.f32 %v898, %v821
      %v901 = vmax.f32 %v899, %v827
      %v902 = vmax.f32 %v900, %v833
      %v903 = vmax.f32 %v901, %v839
      %v904 = vmax.f32 %v902, %v845
      %v905 = vmax.f32 %v903, %v851
      %v906 = vmax.f32 %v904, %v857
      %v907 = vmax.f32 %v905, %v863
      %v908 = vmax.f32 %v906, %v869
      %v909 = vmax.f32 %v907, %v875
      %v910 = vmax.f32 %v908, %v909
      %v911 = vrot.slane %v910, 4
      %v912 = vmax.f32 %v910, %v911
      %v913 = vrot.slane %v912, 2
      %v914 = vmax.f32 %v912, %v913
      %v915 = vrot.slane %v914, 1
      %v916 = vmax.f32 %v914, %v915
      %v917 = vmax.f32 %v691, %v703
      %v918 = vmax.f32 %v697, %v709
      %v919 = vmax.f32 %v917, %v715
      %v920 = vmax.f32 %v918, %v721
      %v921 = vmax.f32 %v919, %v727
      %v922 = vmax.f32 %v920, %v733
      %v923 = vmax.f32 %v921, %v739
      %v924 = vmax.f32 %v922, %v745
      %v925 = vmax.f32 %v923, %v751
      %v926 = vmax.f32 %v924, %v757
      %v927 = vmax.f32 %v925, %v763
      %v928 = vmax.f32 %v926, %v769
      %v929 = vmax.f32 %v927, %v775
      %v930 = vmax.f32 %v928, %v781
      %v931 = vmax.f32 %v929, %v787
      %v932 = vmax.f32 %v930, %v793
      %v933 = vmax.f32 %v931, %v799
      %v934 = vmax.f32 %v932, %v805
      %v935 = vmax.f32 %v933, %v811
      %v936 = vmax.f32 %v934, %v817
      %v937 = vmax.f32 %v935, %v823
      %v938 = vmax.f32 %v936, %v829
      %v939 = vmax.f32 %v937, %v835
      %v940 = vmax.f32 %v938, %v841
      %v941 = vmax.f32 %v939, %v847
      %v942 = vmax.f32 %v940, %v853
      %v943 = vmax.f32 %v941, %v859
      %v944 = vmax.f32 %v942, %v865
      %v945 = vmax.f32 %v943, %v871
      %v946 = vmax.f32 %v944, %v877
      %v947 = vmax.f32 %v945, %v946
      %v948 = vrot.slane %v947, 4
      %v949 = vmax.f32 %v947, %v948
      %v950 = vrot.slane %v949, 2
      %v951 = vmax.f32 %v949, %v950
      %v952 = vrot.slane %v951, 1
      %v953 = vmax.f32 %v951, %v952
      %v956 = vcombine.low %v916, %v953
      %v958 = vunpack.c.l.s4 1966171168
      %v959 = vunpack.c.0.s8 %v958
      %v960 = vlaneseq
      %v961 = vshrl.u32 %v960, 7
      %v962 = vsub.s32 %v959, %v961
      %v963 = vrot.slane %v956, %v962
      %v965 = vunpack.c.l.s4 1966171168
      %v966 = vunpack.c.0.s8 %v965
      %v967 = vlaneseq
      %v968 = vshrl.u32 %v967, 7
      %v969 = vsub.s32 %v966, %v968
      %v970 = vrot.slane %v963, %v969
      %v972 = vadd.f32 %v879, %v970
      %v973 = vlaneseq
      %vm974 = vcmp.ge.s32.totalorder %v973, 0
      %vm975 = vcmp.lt.s32.totalorder %v973, 256
      %vm976 = vmand %vm974, %vm975
      %977 = vst.msk [vmem:[#allocation3] sm:$0x3] %vm976, %v972
      %p978 = scmp.eq.s32.totalorder %s20, 1
      // Predicated region
      $region41: #{coatt_layer.3} parent=35 // pred_check
        %p979 = pneg %p978
      $region42: #{coatt_layer.3} parent=35 // pred_check_branch
        %981 = sbr.rel (%p979) target = $region44
      $region43: #{coatt_layer.3} parent=35 // pred_region
        %v982 = vld [vmem:[#allocation3] sm:$0x3]
        %v983 = vmul.f32 %v982, 0.044194173
        %v985 = vlaneseq
        %v986 = vshrl.u32 %v985, 7
        %v987 = vsub.s32 0, %v986
        %v988 = vrot.slane %v983, %v987
        %v989 = vlaneseq
        %v990 = vshrl.u32 %v989, 7
        %v991 = vsub.s32 1, %v990
        %v992 = vrot.slane %v983, %v991
        %vm995 = vcmask 1040384
        %v996 = vsel %vm995, %v988, -inf
        %v997 = vsel %vm995, %v992, -inf
        %v998 = vmax.f32 %v996, %v997
        %999 = vmax.xlane.f32.xlu0 %v998
        %v1000 = vpop.xlane.xlu0 %999
        %v1002 = vlaneseq
        %v1003 = vshrl.u32 %v1002, 7
        %v1004 = vsub.s32 0, %v1003
        %v1005 = vrot.slane %v1000, %v1004
        %v1007 = vsub.f32 %v983, %v1005
        %v1008 = vmul.f32 %v1007, 1.442695
        %v1009 = vpow.pop %v1008
        %v1011 = vlaneseq
        %v1012 = vshrl.u32 %v1011, 7
        %v1013 = vsub.s32 0, %v1012
        %v1014 = vrot.slane %v1009, %v1013
        %v1015 = vlaneseq
        %v1016 = vshrl.u32 %v1015, 7
        %v1017 = vsub.s32 1, %v1016
        %v1018 = vrot.slane %v1009, %v1017
        %v1021 = vsel %vm995, %v1014, 0.0
        %v1022 = vsel %vm995, %v1018, 0.0
        %v1023 = vadd.f32 %v1021, %v1022
        %1024 = vadd.xlane.f32.xlu0 %v1023
        %v1025 = vpop.xlane.xlu0 %1024
        %v1027 = vlaneseq
        %v1028 = vshrl.u32 %v1027, 7
        %v1029 = vsub.s32 0, %v1028
        %v1030 = vrot.slane %v1025, %v1029
        %v1032 = vrcp.pop %v1030
        %v1033 = vmul.f32 %v1009, %v1032
        %v1034 = vld [vmem:[%s204] sm:$0xff]
        %v1035 = vld [vmem:[%s204 + $0x8] sm:$0xff]
        %v1036 = vld [vmem:[%s204 + $0x10] sm:$0xff]
        %v1037 = vld [vmem:[%s204 + $0x18] sm:$0xff]
        %v1038 = vld [vmem:[%s204 + $0x20] sm:$0xff]
        %v1039 = vld [vmem:[%s204 + $0x28] sm:$0xff]
        %v1040 = vld [vmem:[%s204 + $0x30] sm:$0xff]
        %v1041 = vld [vmem:[%s204 + $0x38] sm:$0xff]
        %v1042 = vld [vmem:[%s204 + $0x40] sm:$0xff]
        %v1043 = vld [vmem:[%s204 + $0x48] sm:$0xff]
        %v1044 = vld [vmem:[%s204 + $0x50] sm:$0xff]
        %v1045 = vld [vmem:[%s204 + $0x58] sm:$0xff]
        %v1046 = vld [vmem:[%s204 + $0x60] sm:$0xff]
        %v1047 = vld [vmem:[%s204 + $0x68] sm:$0xff]
        %v1048 = vld [vmem:[%s204 + $0x70] sm:$0xff]
        %v1049 = vld [vmem:[%s204 + $0x78] sm:$0xff]
        %v1050 = vld [vmem:[%s204 + $0x80] sm:$0xff]
        %v1051 = vld [vmem:[%s204 + $0x88] sm:$0xff]
        %v1052 = vld [vmem:[%s204 + $0x90] sm:$0xff]
        %v1053 = vld [vmem:[%s204 + $0x98] sm:$0xff]
        %v1054 = vld [vmem:[%s204 + $0xa0] sm:$0xff]
        %v1055 = vld [vmem:[%s204 + $0xa8] sm:$0xff]
        %v1056 = vld [vmem:[%s204 + $0xb0] sm:$0xff]
        %v1057 = vld [vmem:[%s204 + $0xb8] sm:$0xff]
        %v1058 = vld [vmem:[%s204 + $0xc0] sm:$0xff]
        %v1059 = vld [vmem:[%s204 + $0xc8] sm:$0xff]
        %v1060 = vld [vmem:[%s204 + $0xd0] sm:$0xff]
        %v1061 = vld [vmem:[%s204 + $0xd8] sm:$0xff]
        %v1062 = vld [vmem:[%s204 + $0xe0] sm:$0xff]
        %v1063 = vld [vmem:[%s204 + $0xe8] sm:$0xff]
        %v1064 = vld [vmem:[%s204 + $0xf0] sm:$0xff]
        %v1065 = vld [vmem:[%s204 + $0xf8] sm:$0xff]
        %v1067 = vlaneseq
        %v1068 = vshrl.u32 %v1067, 7
        %v1069 = vsub.s32 0, %v1068
        %v1070 = vrot.slane %v1033, %v1069
        %v1071 = vlaneseq
        %v1072 = vshrl.u32 %v1071, 7
        %v1073 = vsub.s32 1, %v1072
        %v1074 = vrot.slane %v1033, %v1073
        %v1077 = vmul.f32 %v1034, %v1070
        %v1078 = vmul.f32 %v1035, %v1074
        %v1079 = vmul.f32 %v1036, %v1070
        %v1080 = vmul.f32 %v1037, %v1074
        %v1081 = vmul.f32 %v1038, %v1070
        %v1082 = vmul.f32 %v1039, %v1074
        %v1083 = vmul.f32 %v1040, %v1070
        %v1084 = vmul.f32 %v1041, %v1074
        %v1085 = vmul.f32 %v1042, %v1070
        %v1086 = vmul.f32 %v1043, %v1074
        %v1087 = vmul.f32 %v1044, %v1070
        %v1088 = vmul.f32 %v1045, %v1074
        %v1089 = vmul.f32 %v1046, %v1070
        %v1090 = vmul.f32 %v1047, %v1074
        %v1091 = vmul.f32 %v1048, %v1070
        %v1092 = vmul.f32 %v1049, %v1074
        %v1093 = vmul.f32 %v1050, %v1070
        %v1094 = vmul.f32 %v1051, %v1074
        %v1095 = vmul.f32 %v1052, %v1070
        %v1096 = vmul.f32 %v1053, %v1074
        %v1097 = vmul.f32 %v1054, %v1070
        %v1098 = vmul.f32 %v1055, %v1074
        %v1099 = vmul.f32 %v1056, %v1070
        %v1100 = vmul.f32 %v1057, %v1074
        %v1101 = vmul.f32 %v1058, %v1070
        %v1102 = vmul.f32 %v1059, %v1074
        %v1103 = vmul.f32 %v1060, %v1070
        %v1104 = vmul.f32 %v1061, %v1074
        %v1105 = vmul.f32 %v1062, %v1070
        %v1106 = vmul.f32 %v1063, %v1074
        %v1107 = vmul.f32 %v1064, %v1070
        %v1108 = vmul.f32 %v1065, %v1074
        %v1109 = vadd.f32 %v1077, %v1078
        %1110 = vadd.xlane.f32.xlu0 %v1109
        %v1111 = vpop.xlane.xlu0 %1110
        %v1112 = vadd.f32 %v1079, %v1080
        %1113 = vadd.xlane.f32.xlu0 %v1112
        %v1114 = vpop.xlane.xlu0 %1113
        %v1115 = vadd.f32 %v1081, %v1082
        %1116 = vadd.xlane.f32.xlu0 %v1115
        %v1117 = vpop.xlane.xlu0 %1116
        %v1118 = vadd.f32 %v1083, %v1084
        %1119 = vadd.xlane.f32.xlu0 %v1118
        %v1120 = vpop.xlane.xlu0 %1119
        %v1121 = vadd.f32 %v1085, %v1086
        %1122 = vadd.xlane.f32.xlu0 %v1121
        %v1123 = vpop.xlane.xlu0 %1122
        %v1124 = vadd.f32 %v1087, %v1088
        %1125 = vadd.xlane.f32.xlu0 %v1124
        %v1126 = vpop.xlane.xlu0 %1125
        %v1127 = vadd.f32 %v1089, %v1090
        %1128 = vadd.xlane.f32.xlu0 %v1127
        %v1129 = vpop.xlane.xlu0 %1128
        %v1130 = vadd.f32 %v1091, %v1092
        %1131 = vadd.xlane.f32.xlu0 %v1130
        %v1132 = vpop.xlane.xlu0 %1131
        %v1133 = vadd.f32 %v1093, %v1094
        %1134 = vadd.xlane.f32.xlu0 %v1133
        %v1135 = vpop.xlane.xlu0 %1134
        %v1136 = vadd.f32 %v1095, %v1096
        %1137 = vadd.xlane.f32.xlu0 %v1136
        %v1138 = vpop.xlane.xlu0 %1137
        %v1139 = vadd.f32 %v1097, %v1098
        %1140 = vadd.xlane.f32.xlu0 %v1139
        %v1141 = vpop.xlane.xlu0 %1140
        %v1142 = vadd.f32 %v1099, %v1100
        %1143 = vadd.xlane.f32.xlu0 %v1142
        %v1144 = vpop.xlane.xlu0 %1143
        %v1145 = vadd.f32 %v1101, %v1102
        %1146 = vadd.xlane.f32.xlu0 %v1145
        %v1147 = vpop.xlane.xlu0 %1146
        %v1148 = vadd.f32 %v1103, %v1104
        %1149 = vadd.xlane.f32.xlu0 %v1148
        %v1150 = vpop.xlane.xlu0 %1149
        %v1151 = vadd.f32 %v1105, %v1106
        %1152 = vadd.xlane.f32.xlu0 %v1151
        %v1153 = vpop.xlane.xlu0 %1152
        %v1154 = vadd.f32 %v1107, %v1108
        %1155 = vadd.xlane.f32.xlu0 %v1154
        %v1156 = vpop.xlane.xlu0 %1155
        %vm1157 = vcmask 7168
        %1158 = vst.msk [vmem:[%s209] sm:$0xff] %vm1157, %v1111
        %1159 = vst.msk [vmem:[%s209 + $0x8] sm:$0xff] %vm1157, %v1114
        %1160 = vst.msk [vmem:[%s209 + $0x10] sm:$0xff] %vm1157, %v1117
        %1161 = vst.msk [vmem:[%s209 + $0x18] sm:$0xff] %vm1157, %v1120
        %1162 = vst.msk [vmem:[%s209 + $0x20] sm:$0xff] %vm1157, %v1123
        %1163 = vst.msk [vmem:[%s209 + $0x28] sm:$0xff] %vm1157, %v1126
        %1164 = vst.msk [vmem:[%s209 + $0x30] sm:$0xff] %vm1157, %v1129
        %1165 = vst.msk [vmem:[%s209 + $0x38] sm:$0xff] %vm1157, %v1132
        %1166 = vst.msk [vmem:[%s209 + $0x40] sm:$0xff] %vm1157, %v1135
        %1167 = vst.msk [vmem:[%s209 + $0x48] sm:$0xff] %vm1157, %v1138
        %1168 = vst.msk [vmem:[%s209 + $0x50] sm:$0xff] %vm1157, %v1141
        %1169 = vst.msk [vmem:[%s209 + $0x58] sm:$0xff] %vm1157, %v1144
        %1170 = vst.msk [vmem:[%s209 + $0x60] sm:$0xff] %vm1157, %v1147
        %1171 = vst.msk [vmem:[%s209 + $0x68] sm:$0xff] %vm1157, %v1150
        %1172 = vst.msk [vmem:[%s209 + $0x70] sm:$0xff] %vm1157, %v1153
        %1173 = vst.msk [vmem:[%s209 + $0x78] sm:$0xff] %vm1157, %v1156
      $region44: #{coatt_layer.3} parent=35 // pred_fallthru
        _
      %p1174 = scmp.lt.s32.totalorder %s19, 1
      %s1175 = scalar_select %p1174, %s19, 1
      %s1176 = smul.addr %s1175, 16
      %s1177 = smul.addr %s1176, 8
      %s1178 = scalar_lea.vmem %s4, %s1177
      // Predicated region
      $region45: #{coatt_layer.3} parent=35 // pred_check
        %p1179 = pneg %p134
      $region46: #{coatt_layer.3} parent=35 // pred_check_branch
        %1181 = sbr.rel (%p1179) target = $region48
      $region47: #{coatt_layer.3} parent=35 // pred_region
        _
      $region48: #{coatt_layer.3} parent=35 // pred_fallthru
        _
    $region36: #{coatt_layer.3} parent=5 // pred_fallthru
      _
    %p1182 = scmp.le.s32.totalorder 2, %s10
    // Predicated region
    $region49: #{coatt_layer.3} parent=5 // pred_check
      %p1183 = pneg %p1182
    $region50: #{coatt_layer.3} parent=5 // pred_check_branch
      %1185 = sbr.rel (%p1183) target = $region52
    $region51: #{coatt_layer.3} parent=5 // pred_region
      %s1186 = ssub.s32 %s10, 2
      // Predicated region
      $region53: #{coatt_layer.3} parent=51 // pred_check
        %p1187 = pneg %p140
      $region54: #{coatt_layer.3} parent=51 // pred_check_branch
        %1189 = sbr.rel (%p1187) target = $region56
      $region55: #{coatt_layer.3} parent=51 // pred_region
        %p1190 = scmp.lt.s32.totalorder %s21, 1
        %s1191 = scalar_select %p1190, %s21, 1
        %s1192 = smul.addr %s1191, 16
        %s1193 = smul.addr %s1192, 8
        %s1194 = scalar_lea.vmem %s4, %s1193
      $region56: #{coatt_layer.3} parent=51 // pred_fallthru
        _
    $region52: #{coatt_layer.3} parent=5 // pred_fallthru
      _
  $region6: #{coatt_layer.3} parent=0 // loop_footer
    %s14 = sadd.s32 1, %s10
  $region7: #{coatt_layer.3} parent=0 // loop_footer_branch
    %9 = sbr.rel target = $region3
  $region8: #{coatt_layer.3} parent=0 // loop_exit
    _

</llo_original>
